<compile_context>
chip_gen: v6e
topology: v6e:2x2x1
jax: 0.10.0
libtpu: 0.0.40
codegen_flags: <defaults>
</compile_context>

<pallas_src>
import functools

import jax
import jax.numpy as jnp
from jax import lax
from jax.experimental import pallas as pl
from jax.experimental.pallas import tpu as pltpu


# ----------------------------------------------------------------------------
# Fused kernel: one batch chunk (default: the whole batch) per grid step
# ----------------------------------------------------------------------------
def _fused_decoder_kernel(x_ref, hc0_ref, wih_ref, whh_ref, blstm_ref,
                          mem_ref, mask_ref, copy_ref,
                          wattn_ref, wh_slab_ref, wc_slab_ref, wgx_ref,
                          b_slab_ref,
                          slab_ref, copy_out_ref, hcT_ref,
                          out_scratch, *, approx_recip=True):
    BB, T, E = x_ref.shape
    H = whh_ref.shape[0]
    f32 = jnp.float32

    # ---- batched LSTM recurrence ----
    whh = whh_ref[...]                                            # (H, 4H)
    x2 = x_ref[...].reshape(BB * T, E)                            # (BB*T, E)
    # hoisted input projection: one (BB*T,E)@(E,4H) matmul + bias
    z_x = (jnp.dot(x2, wih_ref[...], preferred_element_type=f32)
           + blstm_ref[...]).reshape(BB, T, 4 * H)                # (BB,T,4H)

    h = hc0_ref[:, 0, :]                                          # (BB, H)
    c = hc0_ref[:, 1, :]                                          # (BB, H)

    # TODO(synk): for large T switch to lax.fori_loop over the scratch; at
    #             T=8 a static unroll keeps everything in vregs.
    for t in range(T):
        z = z_x[:, t, :] + jnp.dot(h, whh, preferred_element_type=f32)  # (BB,4H)
        zs = jax.nn.sigmoid(z)            # one full-row EUP pass
        zt = jnp.tanh(z)                  # one full-row EUP pass
        i_g = zs[:, 0 * H:1 * H]
        f_g = zs[:, 1 * H:2 * H]
        g_g = zt[:, 2 * H:3 * H]
        o_g = zs[:, 3 * H:4 * H]
        c = f_g * c + i_g * g_g
        h = o_g * jnp.tanh(c)
        out_scratch[:, t, :] = h          # write into VMEM scratch row

    hcT_ref[:, 0, :] = h                  # fused (BB,2,H) state output
    hcT_ref[:, 1, :] = c

    # ---- attention + pointer + fused gate/affine head (batched) ----
    out_all = out_scratch[...]                                    # (BB, T, H)
    out2 = out_all.reshape(BB * T, H)
    mem = mem_ref[...]                                            # (BB, S, ENC)

    # bilinear ("general") attention scores: (h W_attn) m^T
    proj = jnp.dot(out2, wattn_ref[...],
                   preferred_element_type=f32).reshape(BB, T, -1)  # (BB,T,ENC)
    scores = jnp.einsum('bte,bse->bts', proj, mem,
                        preferred_element_type=f32)               # (BB,T,S)
    scores = jnp.where(mask_ref[...] > 0.5, scores, f32(-1e9))

    # masked softmax over source positions -> pointer distribution
    scores = scores - jnp.max(scores, axis=-1, keepdims=True)
    p = jnp.exp(scores)
    denom = jnp.sum(p, axis=-1, keepdims=True)
    if approx_recip:
        pointer = p * pl.reciprocal(denom, approx=True)
    else:
        pointer = p / denom                                       # exact fallback

    context = jnp.einsum('bts,bse->bte', pointer, mem,
                         preferred_element_type=f32)              # (BB,T,ENC)

    # copy_distribution = pointer @ copy_tokens
    # TODO(synk): at production S/V, add a V-chunk grid axis for this matmul
    #             and set vmem_limit_bytes (copy block can exceed VMEM on v7x).
    copy_out_ref[...] = jnp.einsum('bts,bsv->btv', pointer, copy_ref[...],
                                   preferred_element_type=f32)    # (BB,T,V)

    # fused [affine | gate] slab: columns 0..E-1 = affine, column E = gate
    ctx2 = context.reshape(BB * T, -1)
    slab = (jnp.dot(out2, wh_slab_ref[...], preferred_element_type=f32)
            + jnp.dot(ctx2, wc_slab_ref[...], preferred_element_type=f32)
            + b_slab_ref[...])                                    # (BB*T, E+1)
    # x contributes only to the gate column: tiny matvec, no (E,E) zero block
    gx = jnp.dot(x2, wgx_ref[...], preferred_element_type=f32)    # (BB*T, 1)
    is_gate = lax.broadcasted_iota(jnp.int32, (1, E + 1), 1) == E
    slab = slab + jnp.where(is_gate, gx, f32(0.0))
    # gate sigmoid fused in-kernel (EUP slot idle here)
    slab = jnp.where(is_gate, jax.nn.sigmoid(slab), slab)
    slab_ref[...] = slab.reshape(BB, T, E + 1)


# ----------------------------------------------------------------------------
# Full module forward
# ----------------------------------------------------------------------------
def rnn_decoder_pointer_forward(x, hidden_states, memory, src_mask, copy_tokens,
                                params, *, batch_chunks=1, approx_recip=True):
    """Mirrors RNNDecoderPointer.forward (eval mode, num_layers=1, LSTM cell).

    batch_chunks=1  -> single kernel invocation over the whole batch (v5e/v6e).
    batch_chunks=2  -> 2-way 'parallel' grid, each step owns B/2 batched
                       elements (feeds v7x's two TensorCores).
    """
    # TODO(synk): dropout_layer / inter-layer dropout omitted (eval-mode
    #             identity); only num_layers=1 with an LSTM cell implemented.
    # TODO(synk): at production sizes cast memory/copy_tokens/weights to bf16
    #             at the kernel boundary (keep f32 accumulation).
    h0, c0 = hidden_states
    B, T, E = x.shape
    H = h0.shape[-1]
    S, ENC = memory.shape[1], memory.shape[2]
    V = copy_tokens.shape[-1]
    f32 = jnp.float32

    assert B % batch_chunks == 0, "batch_chunks must divide batch size"
    BB = B // batch_chunks

    # fuse h0/c0 into one lane-dense (B,2,H) input
    hc0 = jnp.stack([h0, c0], axis=1)

    # fuse gate + affine weights into one lane-packed slab: [affine | gate]
    w_h_slab = jnp.concatenate([params["wa_h"], params["wg_h"]], axis=1)   # (H, E+1)
    w_c_slab = jnp.concatenate([params["wa_c"], params["wg_c"]], axis=1)   # (ENC, E+1)
    b_slab = jnp.concatenate([params["ba"], params["bg"]], axis=1)         # (1, E+1)

    kernel = functools.partial(_fused_decoder_kernel, approx_recip=approx_recip)

    slab, copy_dist, hcT = pl.pallas_call(
        kernel,
        out_shape=(jax.ShapeDtypeStruct((B, T, E + 1), f32),
                   jax.ShapeDtypeStruct((B, T, V), f32),
                   jax.ShapeDtypeStruct((B, 2, H), f32)),
        grid_spec=pltpu.PrefetchScalarGridSpec(
            num_scalar_prefetch=0,
            grid=(batch_chunks,),
            in_specs=[
                pl.BlockSpec((BB, T, E), lambda b: (b, 0, 0)),      # x
                pl.BlockSpec((BB, 2, H), lambda b: (b, 0, 0)),      # h0/c0 fused
                pl.BlockSpec((E, 4 * H), lambda b: (0, 0)),         # w_ih
                pl.BlockSpec((H, 4 * H), lambda b: (0, 0)),         # w_hh
                pl.BlockSpec((1, 4 * H), lambda b: (0, 0)),         # b_lstm
                pl.BlockSpec((BB, S, ENC), lambda b: (b, 0, 0)),    # memory
                pl.BlockSpec((BB, 1, S), lambda b: (b, 0, 0)),      # src_mask
                pl.BlockSpec((BB, S, V), lambda b: (b, 0, 0)),      # copy_tokens
                pl.BlockSpec((H, ENC), lambda b: (0, 0)),           # w_attn
                pl.BlockSpec((H, E + 1), lambda b: (0, 0)),         # w_h_slab
                pl.BlockSpec((ENC, E + 1), lambda b: (0, 0)),       # w_c_slab
                pl.BlockSpec((E, 1), lambda b: (0, 0)),             # wg_x
                pl.BlockSpec((1, E + 1), lambda b: (0, 0)),         # b_slab
            ],
            out_specs=[
                pl.BlockSpec((BB, T, E + 1), lambda b: (b, 0, 0)),  # slab
                pl.BlockSpec((BB, T, V), lambda b: (b, 0, 0)),      # copy dist
                pl.BlockSpec((BB, 2, H), lambda b: (b, 0, 0)),      # hT/cT fused
            ],
            scratch_shapes=[pltpu.VMEM((BB, T, H), f32)],
        ),
        compiler_params=pltpu.CompilerParams(
            dimension_semantics=("parallel",)),
    )(x, hc0, params["w_ih"], params["w_hh"], params["b_lstm"],
      memory, src_mask, copy_tokens,
      params["w_attn"], w_h_slab, w_c_slab, params["wg_x"], b_slab)

    feats = slab[..., :E]
    gate = slab[..., E:]            # sigmoid already applied in-kernel
    hT = hcT[:, 0, :]
    cT = hcT[:, 1, :]
    return feats, (hT, cT), copy_dist, gate


# ----------------------------------------------------------------------------
# Pure-JAX reference (for a sanity check)
# ----------------------------------------------------------------------------
def _reference(x, hidden_states, memory, src_mask, copy_tokens, params):
    h, c = hidden_states
    B, T, E = x.shape
    H = h.shape[-1]
    hp = jax.lax.Precision.HIGHEST

    def step(carry, x_t):
        h, c = carry
        z = (jnp.dot(x_t, params["w_ih"], precision=hp)
             + jnp.dot(h, params["w_hh"], precision=hp) + params["b_lstm"][0])
        i_g = jax.nn.sigmoid(z[:, :H])
        f_g = jax.nn.sigmoid(z[:, H:2 * H])
        g_g = jnp.tanh(z[:, 2 * H:3 * H])
        o_g = jax.nn.sigmoid(z[:, 3 * H:])
        c_new = f_g * c + i_g * g_g
        h_new = o_g * jnp.tanh(c_new)
        return (h_new, c_new), h_new

    (hT, cT), out_tm = jax.lax.scan(step, (h, c), jnp.transpose(x, (1, 0, 2)))
    out = jnp.transpose(out_tm, (1, 0, 2))                       # (B,T,H)

    proj = jnp.einsum("bth,he->bte", out, params["w_attn"], precision=hp)
    scores = jnp.einsum("bte,bse->bts", proj, memory, precision=hp)
    scores = jnp.where(src_mask > 0.5, scores, -1e9)
    pointer = jax.nn.softmax(scores, axis=-1)
    context = jnp.einsum("bts,bse->bte", pointer, memory, precision=hp)

    gate = jax.nn.sigmoid(jnp.einsum("bth,ho->bto", out, params["wg_h"], precision=hp)
                          + jnp.einsum("bte,eo->bto", context, params["wg_c"], precision=hp)
                          + jnp.einsum("bte,eo->bto", x, params["wg_x"], precision=hp)
                          + params["bg"][0])
    feats = (jnp.einsum("bth,he->bte", out, params["wa_h"], precision=hp)
             + jnp.einsum("btc,ce->bte", context, params["wa_c"], precision=hp)
             + params["ba"][0])
    copy_dist = jnp.einsum("bts,bsv->btv", pointer, copy_tokens, precision=hp)
    return feats, (hT, cT), copy_dist, gate


# ----------------------------------------------------------------------------
if __name__ == "__main__":
    B, T, S = 2, 8, 8               # batch, tgt_len, src_len
    E, H, ENC, V = 16, 32, 32, 40   # tgt_emb_size, hidden_dim, attn.enc_dim, vocab

    key = jax.random.PRNGKey(0)
    ks = jax.random.split(key, 20)
    f32 = jnp.float32

    # inputs
    x = jax.random.normal(ks[0], (B, T, E), f32)
    h0 = jax.random.normal(ks[1], (B, H), f32)
    c0 = jax.random.normal(ks[2], (B, H), f32)
    memory = jax.random.normal(ks[3], (B, S, ENC), f32)
    src_mask = (jax.random.uniform(ks[4], (B, 1, S)) > 0.2).astype(f32)
    src_mask = src_mask.at[:, :, 0].set(1.0)   # keep at least one valid position
    copy_tokens = jax.random.uniform(ks[5], (B, S, V), f32)

    # deterministic synthetic parameters (stored pre-transposed: (in, out))
    scale = 0.1
    params = {
        "w_ih":   scale * jax.random.normal(ks[6], (E, 4 * H), f32),
        "w_hh":   scale * jax.random.normal(ks[7], (H, 4 * H), f32),
        "b_lstm": scale * jax.random.normal(ks[8], (1, 4 * H), f32),
        "w_attn": scale * jax.random.normal(ks[9], (H, ENC), f32),
        "wg_h":   scale * jax.random.normal(ks[10], (H, 1), f32),
        "wg_c":   scale * jax.random.normal(ks[11], (ENC, 1), f32),
        "wg_x":   scale * jax.random.normal(ks[12], (E, 1), f32),
        "bg":     scale * jax.random.normal(ks[13], (1, 1), f32),
        "wa_h":   scale * jax.random.normal(ks[14], (H, E), f32),
        "wa_c":   scale * jax.random.normal(ks[15], (ENC, E), f32),
        "ba":     scale * jax.random.normal(ks[16], (1, E), f32),
    }

    feats, (hT, cT), copy_dist, gate = jax.block_until_ready(
        rnn_decoder_pointer_forward(x, (h0, c0), memory, src_mask,
                                    copy_tokens, params))

    # sanity check against pure-JAX reference
    rf, (rh, rc), rcd, rg = _reference(x, (h0, c0), memory, src_mask,
                                       copy_tokens, params)
    assert feats.shape == (B, T, E)
    assert copy_dist.shape == (B, T, V)
    assert gate.shape == (B, T, 1)
    assert hT.shape == (B, H) and cT.shape == (B, H)
    for a, b in ((feats, rf), (hT, rh), (cT, rc), (copy_dist, rcd), (gate, rg)):
        assert jnp.all(jnp.isfinite(a))
        assert jnp.allclose(a, b, atol=2e-2, rtol=2e-2)

    print("KERNEL_OK")
</pallas_src>

<mosaic_0001>
module attributes {stable_mosaic.version = 11 : i64} {
  func.func @_fused_decoder_kernel(%arg0: i32, %arg1: memref<2x8x16xf32, #tpu.memory_space<vmem>>, %arg2: memref<2x2x32xf32, #tpu.memory_space<vmem>>, %arg3: memref<16x128xf32, #tpu.memory_space<vmem>>, %arg4: memref<32x128xf32, #tpu.memory_space<vmem>>, %arg5: memref<1x128xf32, #tpu.memory_space<vmem>>, %arg6: memref<2x8x32xf32, #tpu.memory_space<vmem>>, %arg7: memref<2x1x8xf32, #tpu.memory_space<vmem>>, %arg8: memref<2x8x40xf32, #tpu.memory_space<vmem>>, %arg9: memref<32x32xf32, #tpu.memory_space<vmem>>, %arg10: memref<32x17xf32, #tpu.memory_space<vmem>>, %arg11: memref<32x17xf32, #tpu.memory_space<vmem>>, %arg12: memref<16x1xf32, #tpu.memory_space<vmem>>, %arg13: memref<1x17xf32, #tpu.memory_space<vmem>>, %arg14: memref<2x8x17xf32, #tpu.memory_space<vmem>>, %arg15: memref<2x8x40xf32, #tpu.memory_space<vmem>>, %arg16: memref<2x2x32xf32, #tpu.memory_space<vmem>>, %arg17: memref<2x8x32xf32, #tpu.memory_space<vmem>>) attributes {dimension_semantics = [#tpu.dimension_semantics<parallel>], iteration_bounds = array<i64: 1>, scalar_prefetch = 0 : i64, scratch_operands = 1 : i64, tpu.core_type = #tpu.core_type<tc>, window_params = [{transform_indices = @transform_0, window_bounds = array<i64: 2, 8, 16>}, {transform_indices = @transform_1, window_bounds = array<i64: 2, 2, 32>}, {pipeline_mode = #tpu.pipeline_mode<synchronous>, transform_indices = @transform_2, window_bounds = array<i64: 16, 128>}, {pipeline_mode = #tpu.pipeline_mode<synchronous>, transform_indices = @transform_3, window_bounds = array<i64: 32, 128>}, {pipeline_mode = #tpu.pipeline_mode<synchronous>, transform_indices = @transform_4, window_bounds = array<i64: 1, 128>}, {transform_indices = @transform_5, window_bounds = array<i64: 2, 8, 32>}, {transform_indices = @transform_6, window_bounds = array<i64: 2, 1, 8>}, {transform_indices = @transform_7, window_bounds = array<i64: 2, 8, 40>}, {pipeline_mode = #tpu.pipeline_mode<synchronous>, transform_indices = @transform_8, window_bounds = array<i64: 32, 32>}, {pipeline_mode = #tpu.pipeline_mode<synchronous>, transform_indices = @transform_9, window_bounds = array<i64: 32, 17>}, {pipeline_mode = #tpu.pipeline_mode<synchronous>, transform_indices = @transform_10, window_bounds = array<i64: 32, 17>}, {pipeline_mode = #tpu.pipeline_mode<synchronous>, transform_indices = @transform_11, window_bounds = array<i64: 16, 1>}, {pipeline_mode = #tpu.pipeline_mode<synchronous>, transform_indices = @transform_12, window_bounds = array<i64: 1, 17>}, {transform_indices = @transform_13, window_bounds = array<i64: 2, 8, 17>}, {transform_indices = @transform_14, window_bounds = array<i64: 2, 8, 40>}, {transform_indices = @transform_15, window_bounds = array<i64: 2, 2, 32>}]} {
    %c0 = arith.constant 0 : index
    %c0_0 = arith.constant 0 : index
    %0 = vector.load %arg4[%c0, %c0_0] : memref<32x128xf32, #tpu.memory_space<vmem>>, vector<32x128xf32>
    %c0_1 = arith.constant 0 : index
    %c0_2 = arith.constant 0 : index
    %c0_3 = arith.constant 0 : index
    %1 = vector.load %arg1[%c0_1, %c0_2, %c0_3] : memref<2x8x16xf32, #tpu.memory_space<vmem>>, vector<2x8x16xf32>
    %2 = vector.shape_cast %1 : vector<2x8x16xf32> to vector<16x16xf32>
    %c0_4 = arith.constant 0 : index
    %c0_5 = arith.constant 0 : index
    %3 = vector.load %arg3[%c0_4, %c0_5] : memref<16x128xf32, #tpu.memory_space<vmem>>, vector<16x128xf32>
    %cst = arith.constant dense<0.000000e+00> : vector<16x128xf32>
    %4 = tpu.matmul %2, %3, %cst {dimension_numbers = #tpu.dot_dimension_numbers<[1], [0], [0], [1], [0, 0, 1, 1], [], []>} : vector<16x16xf32>, vector<16x128xf32>, vector<16x128xf32> -> vector<16x128xf32>
    %c0_6 = arith.constant 0 : index
    %c0_7 = arith.constant 0 : index
    %5 = vector.load %arg5[%c0_6, %c0_7] : memref<1x128xf32, #tpu.memory_space<vmem>>, vector<1x128xf32>
    %6 = vector.broadcast %5 : vector<1x128xf32> to vector<16x128xf32>
    %7 = arith.addf %4, %6 : vector<16x128xf32>
    %8 = vector.shape_cast %7 : vector<16x128xf32> to vector<2x8x128xf32>
    %c0_8 = arith.constant 0 : index
    %c0_9 = arith.constant 0 : index
    %c0_10 = arith.constant 0 : index
    %9 = vector.load %arg2[%c0_8, %c0_9, %c0_10] : memref<2x2x32xf32, #tpu.memory_space<vmem>>, vector<2x1x32xf32>
    %10 = vector.shape_cast %9 : vector<2x1x32xf32> to vector<2x32xf32>
    %c0_11 = arith.constant 0 : index
    %c1 = arith.constant 1 : index
    %c0_12 = arith.constant 0 : index
    %11 = vector.load %arg2[%c0_11, %c1, %c0_12] : memref<2x2x32xf32, #tpu.memory_space<vmem>>, vector<2x1x32xf32>
    %12 = vector.shape_cast %11 : vector<2x1x32xf32> to vector<2x32xf32>
    %13 = vector.extract_strided_slice %8 {offsets = [0, 0, 0], sizes = [2, 1, 128], strides = [1, 1, 1]} : vector<2x8x128xf32> to vector<2x1x128xf32>
    %14 = vector.shape_cast %13 : vector<2x1x128xf32> to vector<2x128xf32>
    %cst_13 = arith.constant dense<0.000000e+00> : vector<2x128xf32>
    %15 = tpu.matmul %10, %0, %cst_13 {dimension_numbers = #tpu.dot_dimension_numbers<[1], [0], [0], [1], [0, 0, 1, 1], [], []>} : vector<2x32xf32>, vector<32x128xf32>, vector<2x128xf32> -> vector<2x128xf32>
    %16 = arith.addf %14, %15 : vector<2x128xf32>
    %17 = arith.negf %16 : vector<2x128xf32>
    %18 = math.exp %17 : vector<2x128xf32>
    %cst_14 = arith.constant 1.000000e+00 : f32
    %19 = vector.broadcast %cst_14 : f32 to vector<2x128xf32>
    %20 = arith.addf %19, %18 : vector<2x128xf32>
    %21 = arith.divf %19, %20 : vector<2x128xf32>
    %22 = math.tanh %16 : vector<2x128xf32>
    %23 = vector.extract_strided_slice %21 {offsets = [0, 0], sizes = [2, 32], strides = [1, 1]} : vector<2x128xf32> to vector<2x32xf32>
    %24 = vector.extract_strided_slice %21 {offsets = [0, 32], sizes = [2, 32], strides = [1, 1]} : vector<2x128xf32> to vector<2x32xf32>
    %25 = vector.extract_strided_slice %22 {offsets = [0, 64], sizes = [2, 32], strides = [1, 1]} : vector<2x128xf32> to vector<2x32xf32>
    %26 = vector.extract_strided_slice %21 {offsets = [0, 96], sizes = [2, 32], strides = [1, 1]} : vector<2x128xf32> to vector<2x32xf32>
    %27 = arith.mulf %24, %12 : vector<2x32xf32>
    %28 = arith.mulf %23, %25 : vector<2x32xf32>
    %29 = arith.addf %27, %28 : vector<2x32xf32>
    %30 = math.tanh %29 : vector<2x32xf32>
    %31 = arith.mulf %26, %30 : vector<2x32xf32>
    %c0_15 = arith.constant 0 : index
    %c0_16 = arith.constant 0 : index
    %c0_17 = arith.constant 0 : index
    %32 = vector.load %arg17[%c0_15, %c0_16, %c0_17] : memref<2x8x32xf32, #tpu.memory_space<vmem>>, vector<2x1x32xf32>
    %33 = vector.shape_cast %32 : vector<2x1x32xf32> to vector<2x32xf32>
    %34 = vector.shape_cast %31 : vector<2x32xf32> to vector<2x1x32xf32>
    tpu.vector_store %arg17[%c0_15, %c0_16, %c0_17], %34 {strides = array<i32>} : memref<2x8x32xf32, #tpu.memory_space<vmem>>, vector<2x1x32xf32>,
    %35 = vector.extract_strided_slice %8 {offsets = [0, 1, 0], sizes = [2, 1, 128], strides = [1, 1, 1]} : vector<2x8x128xf32> to vector<2x1x128xf32>
    %36 = vector.shape_cast %35 : vector<2x1x128xf32> to vector<2x128xf32>
    %cst_18 = arith.constant dense<0.000000e+00> : vector<2x128xf32>
    %37 = tpu.matmul %31, %0, %cst_18 {dimension_numbers = #tpu.dot_dimension_numbers<[1], [0], [0], [1], [0, 0, 1, 1], [], []>} : vector<2x32xf32>, vector<32x128xf32>, vector<2x128xf32> -> vector<2x128xf32>
    %38 = arith.addf %36, %37 : vector<2x128xf32>
    %39 = arith.negf %38 : vector<2x128xf32>
    %40 = math.exp %39 : vector<2x128xf32>
    %cst_19 = arith.constant 1.000000e+00 : f32
    %41 = vector.broadcast %cst_19 : f32 to vector<2x128xf32>
    %42 = arith.addf %41, %40 : vector<2x128xf32>
    %43 = arith.divf %41, %42 : vector<2x128xf32>
    %44 = math.tanh %38 : vector<2x128xf32>
    %45 = vector.extract_strided_slice %43 {offsets = [0, 0], sizes = [2, 32], strides = [1, 1]} : vector<2x128xf32> to vector<2x32xf32>
    %46 = vector.extract_strided_slice %43 {offsets = [0, 32], sizes = [2, 32], strides = [1, 1]} : vector<2x128xf32> to vector<2x32xf32>
    %47 = vector.extract_strided_slice %44 {offsets = [0, 64], sizes = [2, 32], strides = [1, 1]} : vector<2x128xf32> to vector<2x32xf32>
    %48 = vector.extract_strided_slice %43 {offsets = [0, 96], sizes = [2, 32], strides = [1, 1]} : vector<2x128xf32> to vector<2x32xf32>
    %49 = arith.mulf %46, %29 : vector<2x32xf32>
    %50 = arith.mulf %45, %47 : vector<2x32xf32>
    %51 = arith.addf %49, %50 : vector<2x32xf32>
    %52 = math.tanh %51 : vector<2x32xf32>
    %53 = arith.mulf %48, %52 : vector<2x32xf32>
    %c0_20 = arith.constant 0 : index
    %c1_21 = arith.constant 1 : index
    %c0_22 = arith.constant 0 : index
    %54 = vector.load %arg17[%c0_20, %c1_21, %c0_22] : memref<2x8x32xf32, #tpu.memory_space<vmem>>, vector<2x1x32xf32>
    %55 = vector.shape_cast %54 : vector<2x1x32xf32> to vector<2x32xf32>
    %56 = vector.shape_cast %53 : vector<2x32xf32> to vector<2x1x32xf32>
    tpu.vector_store %arg17[%c0_20, %c1_21, %c0_22], %56 {strides = array<i32>} : memref<2x8x32xf32, #tpu.memory_space<vmem>>, vector<2x1x32xf32>,
    %57 = vector.extract_strided_slice %8 {offsets = [0, 2, 0], sizes = [2, 1, 128], strides = [1, 1, 1]} : vector<2x8x128xf32> to vector<2x1x128xf32>
    %58 = vector.shape_cast %57 : vector<2x1x128xf32> to vector<2x128xf32>
    %cst_23 = arith.constant dense<0.000000e+00> : vector<2x128xf32>
    %59 = tpu.matmul %53, %0, %cst_23 {dimension_numbers = #tpu.dot_dimension_numbers<[1], [0], [0], [1], [0, 0, 1, 1], [], []>} : vector<2x32xf32>, vector<32x128xf32>, vector<2x128xf32> -> vector<2x128xf32>
    %60 = arith.addf %58, %59 : vector<2x128xf32>
    %61 = arith.negf %60 : vector<2x128xf32>
    %62 = math.exp %61 : vector<2x128xf32>
    %cst_24 = arith.constant 1.000000e+00 : f32
    %63 = vector.broadcast %cst_24 : f32 to vector<2x128xf32>
    %64 = arith.addf %63, %62 : vector<2x128xf32>
    %65 = arith.divf %63, %64 : vector<2x128xf32>
    %66 = math.tanh %60 : vector<2x128xf32>
    %67 = vector.extract_strided_slice %65 {offsets = [0, 0], sizes = [2, 32], strides = [1, 1]} : vector<2x128xf32> to vector<2x32xf32>
    %68 = vector.extract_strided_slice %65 {offsets = [0, 32], sizes = [2, 32], strides = [1, 1]} : vector<2x128xf32> to vector<2x32xf32>
    %69 = vector.extract_strided_slice %66 {offsets = [0, 64], sizes = [2, 32], strides = [1, 1]} : vector<2x128xf32> to vector<2x32xf32>
    %70 = vector.extract_strided_slice %65 {offsets = [0, 96], sizes = [2, 32], strides = [1, 1]} : vector<2x128xf32> to vector<2x32xf32>
    %71 = arith.mulf %68, %51 : vector<2x32xf32>
    %72 = arith.mulf %67, %69 : vector<2x32xf32>
    %73 = arith.addf %71, %72 : vector<2x32xf32>
    %74 = math.tanh %73 : vector<2x32xf32>
    %75 = arith.mulf %70, %74 : vector<2x32xf32>
    %c0_25 = arith.constant 0 : index
    %c2 = arith.constant 2 : index
    %c0_26 = arith.constant 0 : index
    %76 = vector.load %arg17[%c0_25, %c2, %c0_26] : memref<2x8x32xf32, #tpu.memory_space<vmem>>, vector<2x1x32xf32>
    %77 = vector.shape_cast %76 : vector<2x1x32xf32> to vector<2x32xf32>
    %78 = vector.shape_cast %75 : vector<2x32xf32> to vector<2x1x32xf32>
    tpu.vector_store %arg17[%c0_25, %c2, %c0_26], %78 {strides = array<i32>} : memref<2x8x32xf32, #tpu.memory_space<vmem>>, vector<2x1x32xf32>,
    %79 = vector.extract_strided_slice %8 {offsets = [0, 3, 0], sizes = [2, 1, 128], strides = [1, 1, 1]} : vector<2x8x128xf32> to vector<2x1x128xf32>
    %80 = vector.shape_cast %79 : vector<2x1x128xf32> to vector<2x128xf32>
    %cst_27 = arith.constant dense<0.000000e+00> : vector<2x128xf32>
    %81 = tpu.matmul %75, %0, %cst_27 {dimension_numbers = #tpu.dot_dimension_numbers<[1], [0], [0], [1], [0, 0, 1, 1], [], []>} : vector<2x32xf32>, vector<32x128xf32>, vector<2x128xf32> -> vector<2x128xf32>
    %82 = arith.addf %80, %81 : vector<2x128xf32>
    %83 = arith.negf %82 : vector<2x128xf32>
    %84 = math.exp %83 : vector<2x128xf32>
    %cst_28 = arith.constant 1.000000e+00 : f32
    %85 = vector.broadcast %cst_28 : f32 to vector<2x128xf32>
    %86 = arith.addf %85, %84 : vector<2x128xf32>
    %87 = arith.divf %85, %86 : vector<2x128xf32>
    %88 = math.tanh %82 : vector<2x128xf32>
    %89 = vector.extract_strided_slice %87 {offsets = [0, 0], sizes = [2, 32], strides = [1, 1]} : vector<2x128xf32> to vector<2x32xf32>
    %90 = vector.extract_strided_slice %87 {offsets = [0, 32], sizes = [2, 32], strides = [1, 1]} : vector<2x128xf32> to vector<2x32xf32>
    %91 = vector.extract_strided_slice %88 {offsets = [0, 64], sizes = [2, 32], strides = [1, 1]} : vector<2x128xf32> to vector<2x32xf32>
    %92 = vector.extract_strided_slice %87 {offsets = [0, 96], sizes = [2, 32], strides = [1, 1]} : vector<2x128xf32> to vector<2x32xf32>
    %93 = arith.mulf %90, %73 : vector<2x32xf32>
    %94 = arith.mulf %89, %91 : vector<2x32xf32>
    %95 = arith.addf %93, %94 : vector<2x32xf32>
    %96 = math.tanh %95 : vector<2x32xf32>
    %97 = arith.mulf %92, %96 : vector<2x32xf32>
    %c0_29 = arith.constant 0 : index
    %c3 = arith.constant 3 : index
    %c0_30 = arith.constant 0 : index
    %98 = vector.load %arg17[%c0_29, %c3, %c0_30] : memref<2x8x32xf32, #tpu.memory_space<vmem>>, vector<2x1x32xf32>
    %99 = vector.shape_cast %98 : vector<2x1x32xf32> to vector<2x32xf32>
    %100 = vector.shape_cast %97 : vector<2x32xf32> to vector<2x1x32xf32>
    tpu.vector_store %arg17[%c0_29, %c3, %c0_30], %100 {strides = array<i32>} : memref<2x8x32xf32, #tpu.memory_space<vmem>>, vector<2x1x32xf32>,
    %101 = vector.extract_strided_slice %8 {offsets = [0, 4, 0], sizes = [2, 1, 128], strides = [1, 1, 1]} : vector<2x8x128xf32> to vector<2x1x128xf32>
    %102 = vector.shape_cast %101 : vector<2x1x128xf32> to vector<2x128xf32>
    %cst_31 = arith.constant dense<0.000000e+00> : vector<2x128xf32>
    %103 = tpu.matmul %97, %0, %cst_31 {dimension_numbers = #tpu.dot_dimension_numbers<[1], [0], [0], [1], [0, 0, 1, 1], [], []>} : vector<2x32xf32>, vector<32x128xf32>, vector<2x128xf32> -> vector<2x128xf32>
    %104 = arith.addf %102, %103 : vector<2x128xf32>
    %105 = arith.negf %104 : vector<2x128xf32>
    %106 = math.exp %105 : vector<2x128xf32>
    %cst_32 = arith.constant 1.000000e+00 : f32
    %107 = vector.broadcast %cst_32 : f32 to vector<2x128xf32>
    %108 = arith.addf %107, %106 : vector<2x128xf32>
    %109 = arith.divf %107, %108 : vector<2x128xf32>
    %110 = math.tanh %104 : vector<2x128xf32>
    %111 = vector.extract_strided_slice %109 {offsets = [0, 0], sizes = [2, 32], strides = [1, 1]} : vector<2x128xf32> to vector<2x32xf32>
    %112 = vector.extract_strided_slice %109 {offsets = [0, 32], sizes = [2, 32], strides = [1, 1]} : vector<2x128xf32> to vector<2x32xf32>
    %113 = vector.extract_strided_slice %110 {offsets = [0, 64], sizes = [2, 32], strides = [1, 1]} : vector<2x128xf32> to vector<2x32xf32>
    %114 = vector.extract_strided_slice %109 {offsets = [0, 96], sizes = [2, 32], strides = [1, 1]} : vector<2x128xf32> to vector<2x32xf32>
    %115 = arith.mulf %112, %95 : vector<2x32xf32>
    %116 = arith.mulf %111, %113 : vector<2x32xf32>
    %117 = arith.addf %115, %116 : vector<2x32xf32>
    %118 = math.tanh %117 : vector<2x32xf32>
    %119 = arith.mulf %114, %118 : vector<2x32xf32>
    %c0_33 = arith.constant 0 : index
    %c4 = arith.constant 4 : index
    %c0_34 = arith.constant 0 : index
    %120 = vector.load %arg17[%c0_33, %c4, %c0_34] : memref<2x8x32xf32, #tpu.memory_space<vmem>>, vector<2x1x32xf32>
    %121 = vector.shape_cast %120 : vector<2x1x32xf32> to vector<2x32xf32>
    %122 = vector.shape_cast %119 : vector<2x32xf32> to vector<2x1x32xf32>
    tpu.vector_store %arg17[%c0_33, %c4, %c0_34], %122 {strides = array<i32>} : memref<2x8x32xf32, #tpu.memory_space<vmem>>, vector<2x1x32xf32>,
    %123 = vector.extract_strided_slice %8 {offsets = [0, 5, 0], sizes = [2, 1, 128], strides = [1, 1, 1]} : vector<2x8x128xf32> to vector<2x1x128xf32>
    %124 = vector.shape_cast %123 : vector<2x1x128xf32> to vector<2x128xf32>
    %cst_35 = arith.constant dense<0.000000e+00> : vector<2x128xf32>
    %125 = tpu.matmul %119, %0, %cst_35 {dimension_numbers = #tpu.dot_dimension_numbers<[1], [0], [0], [1], [0, 0, 1, 1], [], []>} : vector<2x32xf32>, vector<32x128xf32>, vector<2x128xf32> -> vector<2x128xf32>
    %126 = arith.addf %124, %125 : vector<2x128xf32>
    %127 = arith.negf %126 : vector<2x128xf32>
    %128 = math.exp %127 : vector<2x128xf32>
    %cst_36 = arith.constant 1.000000e+00 : f32
    %129 = vector.broadcast %cst_36 : f32 to vector<2x128xf32>
    %130 = arith.addf %129, %128 : vector<2x128xf32>
    %131 = arith.divf %129, %130 : vector<2x128xf32>
    %132 = math.tanh %126 : vector<2x128xf32>
    %133 = vector.extract_strided_slice %131 {offsets = [0, 0], sizes = [2, 32], strides = [1, 1]} : vector<2x128xf32> to vector<2x32xf32>
    %134 = vector.extract_strided_slice %131 {offsets = [0, 32], sizes = [2, 32], strides = [1, 1]} : vector<2x128xf32> to vector<2x32xf32>
    %135 = vector.extract_strided_slice %132 {offsets = [0, 64], sizes = [2, 32], strides = [1, 1]} : vector<2x128xf32> to vector<2x32xf32>
    %136 = vector.extract_strided_slice %131 {offsets = [0, 96], sizes = [2, 32], strides = [1, 1]} : vector<2x128xf32> to vector<2x32xf32>
    %137 = arith.mulf %134, %117 : vector<2x32xf32>
    %138 = arith.mulf %133, %135 : vector<2x32xf32>
    %139 = arith.addf %137, %138 : vector<2x32xf32>
    %140 = math.tanh %139 : vector<2x32xf32>
    %141 = arith.mulf %136, %140 : vector<2x32xf32>
    %c0_37 = arith.constant 0 : index
    %c5 = arith.constant 5 : index
    %c0_38 = arith.constant 0 : index
    %142 = vector.load %arg17[%c0_37, %c5, %c0_38] : memref<2x8x32xf32, #tpu.memory_space<vmem>>, vector<2x1x32xf32>
    %143 = vector.shape_cast %142 : vector<2x1x32xf32> to vector<2x32xf32>
    %144 = vector.shape_cast %141 : vector<2x32xf32> to vector<2x1x32xf32>
    tpu.vector_store %arg17[%c0_37, %c5, %c0_38], %144 {strides = array<i32>} : memref<2x8x32xf32, #tpu.memory_space<vmem>>, vector<2x1x32xf32>,
    %145 = vector.extract_strided_slice %8 {offsets = [0, 6, 0], sizes = [2, 1, 128], strides = [1, 1, 1]} : vector<2x8x128xf32> to vector<2x1x128xf32>
    %146 = vector.shape_cast %145 : vector<2x1x128xf32> to vector<2x128xf32>
    %cst_39 = arith.constant dense<0.000000e+00> : vector<2x128xf32>
    %147 = tpu.matmul %141, %0, %cst_39 {dimension_numbers = #tpu.dot_dimension_numbers<[1], [0], [0], [1], [0, 0, 1, 1], [], []>} : vector<2x32xf32>, vector<32x128xf32>, vector<2x128xf32> -> vector<2x128xf32>
    %148 = arith.addf %146, %147 : vector<2x128xf32>
    %149 = arith.negf %148 : vector<2x128xf32>
    %150 = math.exp %149 : vector<2x128xf32>
    %cst_40 = arith.constant 1.000000e+00 : f32
    %151 = vector.broadcast %cst_40 : f32 to vector<2x128xf32>
    %152 = arith.addf %151, %150 : vector<2x128xf32>
    %153 = arith.divf %151, %152 : vector<2x128xf32>
    %154 = math.tanh %148 : vector<2x128xf32>
    %155 = vector.extract_strided_slice %153 {offsets = [0, 0], sizes = [2, 32], strides = [1, 1]} : vector<2x128xf32> to vector<2x32xf32>
    %156 = vector.extract_strided_slice %153 {offsets = [0, 32], sizes = [2, 32], strides = [1, 1]} : vector<2x128xf32> to vector<2x32xf32>
    %157 = vector.extract_strided_slice %154 {offsets = [0, 64], sizes = [2, 32], strides = [1, 1]} : vector<2x128xf32> to vector<2x32xf32>
    %158 = vector.extract_strided_slice %153 {offsets = [0, 96], sizes = [2, 32], strides = [1, 1]} : vector<2x128xf32> to vector<2x32xf32>
    %159 = arith.mulf %156, %139 : vector<2x32xf32>
    %160 = arith.mulf %155, %157 : vector<2x32xf32>
    %161 = arith.addf %159, %160 : vector<2x32xf32>
    %162 = math.tanh %161 : vector<2x32xf32>
    %163 = arith.mulf %158, %162 : vector<2x32xf32>
    %c0_41 = arith.constant 0 : index
    %c6 = arith.constant 6 : index
    %c0_42 = arith.constant 0 : index
    %164 = vector.load %arg17[%c0_41, %c6, %c0_42] : memref<2x8x32xf32, #tpu.memory_space<vmem>>, vector<2x1x32xf32>
    %165 = vector.shape_cast %164 : vector<2x1x32xf32> to vector<2x32xf32>
    %166 = vector.shape_cast %163 : vector<2x32xf32> to vector<2x1x32xf32>
    tpu.vector_store %arg17[%c0_41, %c6, %c0_42], %166 {strides = array<i32>} : memref<2x8x32xf32, #tpu.memory_space<vmem>>, vector<2x1x32xf32>,
    %167 = vector.extract_strided_slice %8 {offsets = [0, 7, 0], sizes = [2, 1, 128], strides = [1, 1, 1]} : vector<2x8x128xf32> to vector<2x1x128xf32>
    %168 = vector.shape_cast %167 : vector<2x1x128xf32> to vector<2x128xf32>
    %cst_43 = arith.constant dense<0.000000e+00> : vector<2x128xf32>
    %169 = tpu.matmul %163, %0, %cst_43 {dimension_numbers = #tpu.dot_dimension_numbers<[1], [0], [0], [1], [0, 0, 1, 1], [], []>} : vector<2x32xf32>, vector<32x128xf32>, vector<2x128xf32> -> vector<2x128xf32>
    %170 = arith.addf %168, %169 : vector<2x128xf32>
    %171 = arith.negf %170 : vector<2x128xf32>
    %172 = math.exp %171 : vector<2x128xf32>
    %cst_44 = arith.constant 1.000000e+00 : f32
    %173 = vector.broadcast %cst_44 : f32 to vector<2x128xf32>
    %174 = arith.addf %173, %172 : vector<2x128xf32>
    %175 = arith.divf %173, %174 : vector<2x128xf32>
    %176 = math.tanh %170 : vector<2x128xf32>
    %177 = vector.extract_strided_slice %175 {offsets = [0, 0], sizes = [2, 32], strides = [1, 1]} : vector<2x128xf32> to vector<2x32xf32>
    %178 = vector.extract_strided_slice %175 {offsets = [0, 32], sizes = [2, 32], strides = [1, 1]} : vector<2x128xf32> to vector<2x32xf32>
    %179 = vector.extract_strided_slice %176 {offsets = [0, 64], sizes = [2, 32], strides = [1, 1]} : vector<2x128xf32> to vector<2x32xf32>
    %180 = vector.extract_strided_slice %175 {offsets = [0, 96], sizes = [2, 32], strides = [1, 1]} : vector<2x128xf32> to vector<2x32xf32>
    %181 = arith.mulf %178, %161 : vector<2x32xf32>
    %182 = arith.mulf %177, %179 : vector<2x32xf32>
    %183 = arith.addf %181, %182 : vector<2x32xf32>
    %184 = math.tanh %183 : vector<2x32xf32>
    %185 = arith.mulf %180, %184 : vector<2x32xf32>
    %c0_45 = arith.constant 0 : index
    %c7 = arith.constant 7 : index
    %c0_46 = arith.constant 0 : index
    %186 = vector.load %arg17[%c0_45, %c7, %c0_46] : memref<2x8x32xf32, #tpu.memory_space<vmem>>, vector<2x1x32xf32>
    %187 = vector.shape_cast %186 : vector<2x1x32xf32> to vector<2x32xf32>
    %188 = vector.shape_cast %185 : vector<2x32xf32> to vector<2x1x32xf32>
    tpu.vector_store %arg17[%c0_45, %c7, %c0_46], %188 {strides = array<i32>} : memref<2x8x32xf32, #tpu.memory_space<vmem>>, vector<2x1x32xf32>,
    %c0_47 = arith.constant 0 : index
    %c0_48 = arith.constant 0 : index
    %c0_49 = arith.constant 0 : index
    %189 = vector.load %arg16[%c0_47, %c0_48, %c0_49] : memref<2x2x32xf32, #tpu.memory_space<vmem>>, vector<2x1x32xf32>
    %190 = vector.shape_cast %189 : vector<2x1x32xf32> to vector<2x32xf32>
    %191 = vector.shape_cast %185 : vector<2x32xf32> to vector<2x1x32xf32>
    tpu.vector_store %arg16[%c0_47, %c0_48, %c0_49], %191 {strides = array<i32>} : memref<2x2x32xf32, #tpu.memory_space<vmem>>, vector<2x1x32xf32>,
    %c0_50 = arith.constant 0 : index
    %c1_51 = arith.constant 1 : index
    %c0_52 = arith.constant 0 : index
    %192 = vector.load %arg16[%c0_50, %c1_51, %c0_52] : memref<2x2x32xf32, #tpu.memory_space<vmem>>, vector<2x1x32xf32>
    %193 = vector.shape_cast %192 : vector<2x1x32xf32> to vector<2x32xf32>
    %194 = vector.shape_cast %183 : vector<2x32xf32> to vector<2x1x32xf32>
    tpu.vector_store %arg16[%c0_50, %c1_51, %c0_52], %194 {strides = array<i32>} : memref<2x2x32xf32, #tpu.memory_space<vmem>>, vector<2x1x32xf32>,
    %c0_53 = arith.constant 0 : index
    %c0_54 = arith.constant 0 : index
    %c0_55 = arith.constant 0 : index
    %195 = vector.load %arg17[%c0_53, %c0_54, %c0_55] : memref<2x8x32xf32, #tpu.memory_space<vmem>>, vector<2x8x32xf32>
    %196 = vector.shape_cast %195 : vector<2x8x32xf32> to vector<16x32xf32>
    %c0_56 = arith.constant 0 : index
    %c0_57 = arith.constant 0 : index
    %c0_58 = arith.constant 0 : index
    %197 = vector.load %arg6[%c0_56, %c0_57, %c0_58] : memref<2x8x32xf32, #tpu.memory_space<vmem>>, vector<2x8x32xf32>
    %c0_59 = arith.constant 0 : index
    %c0_60 = arith.constant 0 : index
    %198 = vector.load %arg9[%c0_59, %c0_60] : memref<32x32xf32, #tpu.memory_space<vmem>>, vector<32x32xf32>
    %cst_61 = arith.constant dense<0.000000e+00> : vector<16x32xf32>
    %199 = tpu.matmul %196, %198, %cst_61 {dimension_numbers = #tpu.dot_dimension_numbers<[1], [0], [0], [1], [0, 0, 1, 1], [], []>} : vector<16x32xf32>, vector<32x32xf32>, vector<16x32xf32> -> vector<16x32xf32>
    %200 = vector.shape_cast %199 : vector<16x32xf32> to vector<2x8x32xf32>
    "tpu.trace_start"() <{level = 10 : i32, message = "bte,bse->bts"}> : () -> ()
    %cst_62 = arith.constant dense<0.000000e+00> : vector<2x8x8xf32>
    %201 = tpu.matmul %200, %197, %cst_62 {dimension_numbers = #tpu.dot_dimension_numbers<[2], [2], [1], [1], [0, 0, 0, 1, 1, 1], [0], [0]>} : vector<2x8x32xf32>, vector<2x8x32xf32>, vector<2x8x8xf32> -> vector<2x8x8xf32>
    "tpu.trace_stop"() : () -> ()
    %c0_63 = arith.constant 0 : index
    %c0_64 = arith.constant 0 : index
    %c0_65 = arith.constant 0 : index
    %202 = vector.load %arg7[%c0_63, %c0_64, %c0_65] : memref<2x1x8xf32, #tpu.memory_space<vmem>>, vector<2x1x8xf32>
    %cst_66 = arith.constant 5.000000e-01 : f32
    %203 = vector.broadcast %cst_66 : f32 to vector<2x1x8xf32>
    %204 = arith.cmpf ogt, %202, %203 : vector<2x1x8xf32>
    %cst_67 = arith.constant -1.000000e+09 : f32
    %205 = vector.shape_cast %204 : vector<2x1x8xi1> to vector<2x1x8xi1>
    %206 = vector.broadcast %205 : vector<2x1x8xi1> to vector<2x8x8xi1>
    %207 = vector.broadcast %cst_67 : f32 to vector<2x8x8xf32>
    %208 = arith.select %206, %201, %207 : vector<2x8x8xi1>, vector<2x8x8xf32>
    %cst_68 = arith.constant dense<0xFF800000> : vector<2x8xf32>
    %209 = vector.multi_reduction <maximumf>, %208, %cst_68 [2] : vector<2x8x8xf32> to vector<2x8xf32>
    %210 = vector.shape_cast %209 : vector<2x8xf32> to vector<2x8x1xf32>
    %211 = vector.broadcast %210 : vector<2x8x1xf32> to vector<2x8x8xf32>
    %212 = arith.subf %208, %211 : vector<2x8x8xf32>
    %213 = math.exp %212 : vector<2x8x8xf32>
    %cst_69 = arith.constant dense<0.000000e+00> : vector<2x8xf32>
    %214 = vector.multi_reduction <add>, %213, %cst_69 [2] : vector<2x8x8xf32> to vector<2x8xf32>
    %215 = vector.shape_cast %214 : vector<2x8xf32> to vector<2x8x1xf32>
    %216 = tpu.reciprocal %215 {approx = true} : vector<2x8x1xf32> -> vector<2x8x1xf32>
    %217 = vector.broadcast %216 : vector<2x8x1xf32> to vector<2x8x8xf32>
    %218 = arith.mulf %213, %217 : vector<2x8x8xf32>
    "tpu.trace_start"() <{level = 10 : i32, message = "bts,bse->bte"}> : () -> ()
    %cst_70 = arith.constant dense<0.000000e+00> : vector<2x8x32xf32>
    %219 = tpu.matmul %218, %197, %cst_70 {dimension_numbers = #tpu.dot_dimension_numbers<[2], [1], [1], [2], [0, 0, 0, 1, 1, 2], [0], [0]>} : vector<2x8x8xf32>, vector<2x8x32xf32>, vector<2x8x32xf32> -> vector<2x8x32xf32>
    "tpu.trace_stop"() : () -> ()
    %c0_71 = arith.constant 0 : index
    %c0_72 = arith.constant 0 : index
    %c0_73 = arith.constant 0 : index
    %220 = vector.load %arg8[%c0_71, %c0_72, %c0_73] : memref<2x8x40xf32, #tpu.memory_space<vmem>>, vector<2x8x40xf32>
    "tpu.trace_start"() <{level = 10 : i32, message = "bts,bsv->btv"}> : () -> ()
    %cst_74 = arith.constant dense<0.000000e+00> : vector<2x8x40xf32>
    %221 = tpu.matmul %218, %220, %cst_74 {dimension_numbers = #tpu.dot_dimension_numbers<[2], [1], [1], [2], [0, 0, 0, 1, 1, 2], [0], [0]>} : vector<2x8x8xf32>, vector<2x8x40xf32>, vector<2x8x40xf32> -> vector<2x8x40xf32>
    "tpu.trace_stop"() : () -> ()
    %c0_75 = arith.constant 0 : index
    %c0_76 = arith.constant 0 : index
    %c0_77 = arith.constant 0 : index
    %222 = vector.load %arg15[%c0_75, %c0_76, %c0_77] : memref<2x8x40xf32, #tpu.memory_space<vmem>>, vector<2x8x40xf32>
    tpu.vector_store %arg15[%c0_75, %c0_76, %c0_77], %221 {strides = array<i32>} : memref<2x8x40xf32, #tpu.memory_space<vmem>>, vector<2x8x40xf32>,
    %223 = vector.shape_cast %219 : vector<2x8x32xf32> to vector<16x32xf32>
    %c0_78 = arith.constant 0 : index
    %c0_79 = arith.constant 0 : index
    %224 = vector.load %arg10[%c0_78, %c0_79] : memref<32x17xf32, #tpu.memory_space<vmem>>, vector<32x17xf32>
    %cst_80 = arith.constant dense<0.000000e+00> : vector<16x17xf32>
    %225 = tpu.matmul %196, %224, %cst_80 {dimension_numbers = #tpu.dot_dimension_numbers<[1], [0], [0], [1], [0, 0, 1, 1], [], []>} : vector<16x32xf32>, vector<32x17xf32>, vector<16x17xf32> -> vector<16x17xf32>
    %c0_81 = arith.constant 0 : index
    %c0_82 = arith.constant 0 : index
    %226 = vector.load %arg11[%c0_81, %c0_82] : memref<32x17xf32, #tpu.memory_space<vmem>>, vector<32x17xf32>
    %cst_83 = arith.constant dense<0.000000e+00> : vector<16x17xf32>
    %227 = tpu.matmul %223, %226, %cst_83 {dimension_numbers = #tpu.dot_dimension_numbers<[1], [0], [0], [1], [0, 0, 1, 1], [], []>} : vector<16x32xf32>, vector<32x17xf32>, vector<16x17xf32> -> vector<16x17xf32>
    %228 = arith.addf %225, %227 : vector<16x17xf32>
    %c0_84 = arith.constant 0 : index
    %c0_85 = arith.constant 0 : index
    %229 = vector.load %arg13[%c0_84, %c0_85] : memref<1x17xf32, #tpu.memory_space<vmem>>, vector<1x17xf32>
    %230 = vector.broadcast %229 : vector<1x17xf32> to vector<16x17xf32>
    %231 = arith.addf %228, %230 : vector<16x17xf32>
    %c0_86 = arith.constant 0 : index
    %c0_87 = arith.constant 0 : index
    %232 = vector.load %arg12[%c0_86, %c0_87] : memref<16x1xf32, #tpu.memory_space<vmem>>, vector<16x1xf32>
    %cst_88 = arith.constant dense<0.000000e+00> : vector<16x1xf32>
    %233 = tpu.matmul %2, %232, %cst_88 {dimension_numbers = #tpu.dot_dimension_numbers<[1], [0], [0], [1], [0, 0, 1, 1], [], []>} : vector<16x16xf32>, vector<16x1xf32>, vector<16x1xf32> -> vector<16x1xf32>
    %234 = tpu.iota {dimensions = array<i32: 1>} : vector<1x17xi32>
    %c16_i32 = arith.constant 16 : i32
    %235 = vector.broadcast %c16_i32 : i32 to vector<1x17xi32>
    %236 = arith.cmpi eq, %234, %235 : vector<1x17xi32>
    %cst_89 = arith.constant 0.000000e+00 : f32
    %237 = vector.shape_cast %236 : vector<1x17xi1> to vector<1x17xi1>
    %238 = vector.broadcast %237 : vector<1x17xi1> to vector<16x17xi1>
    %239 = vector.shape_cast %233 : vector<16x1xf32> to vector<16x1xf32>
    %240 = vector.broadcast %239 : vector<16x1xf32> to vector<16x17xf32>
    %241 = vector.broadcast %cst_89 : f32 to vector<16x17xf32>
    %242 = arith.select %238, %240, %241 : vector<16x17xi1>, vector<16x17xf32>
    %243 = arith.addf %231, %242 : vector<16x17xf32>
    %244 = arith.negf %243 : vector<16x17xf32>
    %245 = math.exp %244 : vector<16x17xf32>
    %cst_90 = arith.constant 1.000000e+00 : f32
    %246 = vector.broadcast %cst_90 : f32 to vector<16x17xf32>
    %247 = arith.addf %246, %245 : vector<16x17xf32>
    %248 = arith.divf %246, %247 : vector<16x17xf32>
    %249 = vector.shape_cast %236 : vector<1x17xi1> to vector<1x17xi1>
    %250 = vector.broadcast %249 : vector<1x17xi1> to vector<16x17xi1>
    %251 = arith.select %250, %248, %243 : vector<16x17xi1>, vector<16x17xf32>
    %252 = vector.shape_cast %251 : vector<16x17xf32> to vector<2x8x17xf32>
    %c0_91 = arith.constant 0 : index
    %c0_92 = arith.constant 0 : index
    %c0_93 = arith.constant 0 : index
    %253 = vector.load %arg14[%c0_91, %c0_92, %c0_93] : memref<2x8x17xf32, #tpu.memory_space<vmem>>, vector<2x8x17xf32>
    tpu.vector_store %arg14[%c0_91, %c0_92, %c0_93], %252 {strides = array<i32>} : memref<2x8x17xf32, #tpu.memory_space<vmem>>, vector<2x8x17xf32>,
    return
  }
  func.func @transform_0(%arg0: i32) -> (i32, i32, i32) {
    %c0_i32 = arith.constant 0 : i32
    %c0_i32_0 = arith.constant 0 : i32
    %c0_i32_1 = arith.constant 0 : i32
    return %arg0, %c0_i32, %c0_i32_0 : i32, i32, i32
  }
  func.func @transform_1(%arg0: i32) -> (i32, i32, i32) {
    %c0_i32 = arith.constant 0 : i32
    %c0_i32_0 = arith.constant 0 : i32
    %c0_i32_1 = arith.constant 0 : i32
    return %arg0, %c0_i32, %c0_i32_0 : i32, i32, i32
  }
  func.func @transform_2(%arg0: i32) -> (i32, i32) {
    %c0_i32 = arith.constant 0 : i32
    %c0_i32_0 = arith.constant 0 : i32
    %c0_i32_1 = arith.constant 0 : i32
    return %c0_i32, %c0_i32_0 : i32, i32
  }
  func.func @transform_3(%arg0: i32) -> (i32, i32) {
    %c0_i32 = arith.constant 0 : i32
    %c0_i32_0 = arith.constant 0 : i32
    %c0_i32_1 = arith.constant 0 : i32
    return %c0_i32, %c0_i32_0 : i32, i32
  }
  func.func @transform_4(%arg0: i32) -> (i32, i32) {
    %c0_i32 = arith.constant 0 : i32
    %c0_i32_0 = arith.constant 0 : i32
    %c0_i32_1 = arith.constant 0 : i32
    return %c0_i32, %c0_i32_0 : i32, i32
  }
  func.func @transform_5(%arg0: i32) -> (i32, i32, i32) {
    %c0_i32 = arith.constant 0 : i32
    %c0_i32_0 = arith.constant 0 : i32
    %c0_i32_1 = arith.constant 0 : i32
    return %arg0, %c0_i32, %c0_i32_0 : i32, i32, i32
  }
  func.func @transform_6(%arg0: i32) -> (i32, i32, i32) {
    %c0_i32 = arith.constant 0 : i32
    %c0_i32_0 = arith.constant 0 : i32
    %c0_i32_1 = arith.constant 0 : i32
    return %arg0, %c0_i32, %c0_i32_0 : i32, i32, i32
  }
  func.func @transform_7(%arg0: i32) -> (i32, i32, i32) {
    %c0_i32 = arith.constant 0 : i32
    %c0_i32_0 = arith.constant 0 : i32
    %c0_i32_1 = arith.constant 0 : i32
    return %arg0, %c0_i32, %c0_i32_0 : i32, i32, i32
  }
  func.func @transform_8(%arg0: i32) -> (i32, i32) {
    %c0_i32 = arith.constant 0 : i32
    %c0_i32_0 = arith.constant 0 : i32
    %c0_i32_1 = arith.constant 0 : i32
    return %c0_i32, %c0_i32_0 : i32, i32
  }
  func.func @transform_9(%arg0: i32) -> (i32, i32) {
    %c0_i32 = arith.constant 0 : i32
    %c0_i32_0 = arith.constant 0 : i32
    %c0_i32_1 = arith.constant 0 : i32
    return %c0_i32, %c0_i32_0 : i32, i32
  }
  func.func @transform_10(%arg0: i32) -> (i32, i32) {
    %c0_i32 = arith.constant 0 : i32
    %c0_i32_0 = arith.constant 0 : i32
    %c0_i32_1 = arith.constant 0 : i32
    return %c0_i32, %c0_i32_0 : i32, i32
  }
  func.func @transform_11(%arg0: i32) -> (i32, i32) {
    %c0_i32 = arith.constant 0 : i32
    %c0_i32_0 = arith.constant 0 : i32
    %c0_i32_1 = arith.constant 0 : i32
    return %c0_i32, %c0_i32_0 : i32, i32
  }
  func.func @transform_12(%arg0: i32) -> (i32, i32) {
    %c0_i32 = arith.constant 0 : i32
    %c0_i32_0 = arith.constant 0 : i32
    %c0_i32_1 = arith.constant 0 : i32
    return %c0_i32, %c0_i32_0 : i32, i32
  }
  func.func @transform_13(%arg0: i32) -> (i32, i32, i32) {
    %c0_i32 = arith.constant 0 : i32
    %c0_i32_0 = arith.constant 0 : i32
    %c0_i32_1 = arith.constant 0 : i32
    return %arg0, %c0_i32, %c0_i32_0 : i32, i32, i32
  }
  func.func @transform_14(%arg0: i32) -> (i32, i32, i32) {
    %c0_i32 = arith.constant 0 : i32
    %c0_i32_0 = arith.constant 0 : i32
    %c0_i32_1 = arith.constant 0 : i32
    return %arg0, %c0_i32, %c0_i32_0 : i32, i32, i32
  }
  func.func @transform_15(%arg0: i32) -> (i32, i32, i32) {
    %c0_i32 = arith.constant 0 : i32
    %c0_i32_0 = arith.constant 0 : i32
    %c0_i32_1 = arith.constant 0 : i32
    return %arg0, %c0_i32, %c0_i32_0 : i32, i32, i32
  }
}

</mosaic_0001>

<llo_original>
// kernel: tpu_custom_call.1
$region0: #{tpu_custom_call.1}
  #allocation0 [shape = 'u32[]', space=smem, size = 0x4, offset = 0x4, fixed_abs, tag = 'smem constant byte address 0x4 - core index']
  #allocation1 [shape = 'u32[144,128]{1,0:T(1,128)}', space=vmem, size = 0x12000, scoped, tag = 'internal scratch']
  #allocation2 [shape = 'f32[2,8,32]{2,1,0:T(8,128)}', space=vmem, size = 0x2000, scoped, tag = 'scratch operand']
  %s0 = inlined_call_operand.vmem [shape: f32[2,8,16], index: 0, kind: input, shape index: {}]
  %s1 = inlined_call_operand.vmem [shape: f32[2,2,32], index: 1, kind: input, shape index: {}]
  %s2 = inlined_call_operand.hbm [shape: f32[16,128], index: 2, kind: input, shape index: {}]
  %s3 = inlined_call_operand.vmem [shape: f32[32,128], index: 3, kind: input, shape index: {}]
  %s4 = inlined_call_operand.vmem [shape: f32[1,128], index: 4, kind: input, shape index: {}]
  %s5 = inlined_call_operand.hbm [shape: f32[2,8,32], index: 5, kind: input, shape index: {}]
  %s6 = inlined_call_operand.vmem [shape: f32[2,1,8], index: 6, kind: input, shape index: {}]
  %s7 = inlined_call_operand.hbm [shape: f32[2,8,40], index: 7, kind: input, shape index: {}]
  %s8 = inlined_call_operand.vmem [shape: f32[32,32], index: 8, kind: input, shape index: {}]
  %s9 = inlined_call_operand.vmem [shape: f32[32,17], index: 9, kind: input, shape index: {}]
  %s10 = inlined_call_operand.vmem [shape: f32[32,17], index: 10, kind: input, shape index: {}]
  %s11 = inlined_call_operand.vmem [shape: f32[16,1], index: 11, kind: input, shape index: {}]
  %s12 = inlined_call_operand.vmem [shape: f32[1,17], index: 12, kind: input, shape index: {}]
  %s13 = inlined_call_operand.hbm [shape: f32[2,8,17], index: 13, kind: output, shape index: {0}]
  %s14 = inlined_call_operand.hbm [shape: f32[2,8,40], index: 14, kind: output, shape index: {1}]
  %s15 = inlined_call_operand.hbm [shape: f32[2,2,32], index: 15, kind: output, shape index: {2}]
  %16 = xla_tuple %s13, %s14, %s15
  %s17 = sld [smem:[#allocation0]]
  $region90: #{tpu_custom_call.1} parent=0
    _
  %s19 = ssub.s32 1, %s17
  %s20 = scalar_select 0, %s19, %s17
  $region1: #{tpu_custom_call.1} parent=0
    #allocation3 [shape = 'u8[8192]{0}', space=vmem, size = 0x2000, scoped, tag = 'input window, operand 2, single buffered']
    #allocation4 [shape = 's32[1]{0}', space=sflag, size = 0x4, scoped, tag = 'scoped memory for tpu_custom_call.1']
    #allocation5 [shape = 's32[1]{0}', space=sflag, size = 0x4, scoped, tag = 'scoped memory for tpu_custom_call.1']
    #allocation6 [shape = 'u8[8192]{0}', space=vmem, size = 0x2000, scoped, tag = 'input window, operand 5, single buffered']
    #allocation7 [shape = 's32[1]{0}', space=sflag, size = 0x4, scoped, tag = 'scoped memory for tpu_custom_call.1']
    #allocation8 [shape = 'u8[8192]{0}', space=vmem, size = 0x2000, scoped, tag = 'input window, operand 7, single buffered']
    #allocation9 [shape = 'u8[8192]{0}', space=vmem, size = 0x2000, scoped, tag = 'output window, operand 0, single buffered']
    #allocation10 [shape = 'u8[8192]{0}', space=vmem, size = 0x2000, scoped, tag = 'output window, operand 1, single buffered']
    #allocation11 [shape = 's32[1]{0}', space=sflag, size = 0x4, scoped, tag = 'scoped memory for tpu_custom_call.1']
    #allocation12 [shape = 'u8[2048]{0}', space=vmem, size = 0x800, scoped, tag = 'output window, operand 2, single buffered']
    %21 = vsyncpa [#allocation4], 0
    %22 = vsyncpa [#allocation7], 0
    %23 = vsyncpa [#allocation5], 0
    %24 = vsyncpa [#allocation11], 0
    // Predicated region
    $region2: #{tpu_custom_call.1} parent=1 // pred_check
      _
    $region3: #{tpu_custom_call.1} parent=1 // pred_check_branch
      %26 = sbr.rel (0) target = $region5
    $region4: #{tpu_custom_call.1} parent=1 // pred_region
      _
    $region5: #{tpu_custom_call.1} parent=1 // pred_fallthru
      _
    // Predicated region
    $region6: #{tpu_custom_call.1} parent=1 // pred_check
      _
    $region7: #{tpu_custom_call.1} parent=1 // pred_check_branch
      %28 = sbr.rel (0) target = $region9
    $region8: #{tpu_custom_call.1} parent=1 // pred_region
      _
    $region9: #{tpu_custom_call.1} parent=1 // pred_fallthru
      _
    // Predicated region
    $region10: #{tpu_custom_call.1} parent=1 // pred_check
      _
    $region11: #{tpu_custom_call.1} parent=1 // pred_check_branch
      %30 = sbr.rel (0) target = $region13
    $region12: #{tpu_custom_call.1} parent=1 // pred_region
      %s32 = ssub.s32 256, 256
      %33 = vsyncadd [#allocation4], %s32
      %s34 = sshll.u32 [#allocation3], 4
      %s35 = int_to_ptr.vmem [resolvable:$true] %s34
      %40 = dma.hbm_to_vmem [thread:$0]  %s2, 256, %s35, [#allocation4], 128, 128, 8
    $region13: #{tpu_custom_call.1} parent=1 // pred_fallthru
      _
    // Predicated region
    $region14: #{tpu_custom_call.1} parent=1 // pred_check
      _
    $region15: #{tpu_custom_call.1} parent=1 // pred_check_branch
      %42 = sbr.rel (0) target = $region17
    $region16: #{tpu_custom_call.1} parent=1 // pred_region
      _
    $region17: #{tpu_custom_call.1} parent=1 // pred_fallthru
      _
    // Predicated region
    $region18: #{tpu_custom_call.1} parent=1 // pred_check
      _
    $region19: #{tpu_custom_call.1} parent=1 // pred_check_branch
      %44 = sbr.rel (0) target = $region21
    $region20: #{tpu_custom_call.1} parent=1 // pred_region
      _
    $region21: #{tpu_custom_call.1} parent=1 // pred_fallthru
      _
    // Predicated region
    $region22: #{tpu_custom_call.1} parent=1 // pred_check
      _
    $region23: #{tpu_custom_call.1} parent=1 // pred_check_branch
      %46 = sbr.rel (0) target = $region25
    $region24: #{tpu_custom_call.1} parent=1 // pred_region
      %s48 = ssub.s32 256, 256
      %49 = vsyncadd [#allocation7], %s48
      %s50 = sshll.u32 [#allocation6], 4
      %s51 = int_to_ptr.vmem [resolvable:$true] %s50
      %56 = dma.hbm_to_vmem [thread:$0]  %s5, 256, %s51, [#allocation7], 128, 128, 8
    $region25: #{tpu_custom_call.1} parent=1 // pred_fallthru
      _
    // Predicated region
    $region26: #{tpu_custom_call.1} parent=1 // pred_check
      _
    $region27: #{tpu_custom_call.1} parent=1 // pred_check_branch
      %58 = sbr.rel (0) target = $region29
    $region28: #{tpu_custom_call.1} parent=1 // pred_region
      _
    $region29: #{tpu_custom_call.1} parent=1 // pred_fallthru
      _
    // Predicated region
    $region30: #{tpu_custom_call.1} parent=1 // pred_check
      _
    $region31: #{tpu_custom_call.1} parent=1 // pred_check_branch
      %60 = sbr.rel (0) target = $region33
    $region32: #{tpu_custom_call.1} parent=1 // pred_region
      %s62 = ssub.s32 256, 256
      %63 = vsyncadd [#allocation7], %s62
      %s64 = sshll.u32 [#allocation8], 4
      %s65 = int_to_ptr.vmem [resolvable:$true] %s64
      %70 = dma.hbm_to_vmem [thread:$0]  %s7, 256, %s65, [#allocation7], 128, 128, 8
    $region33: #{tpu_custom_call.1} parent=1 // pred_fallthru
      _
    // Predicated region
    $region34: #{tpu_custom_call.1} parent=1 // pred_check
      _
    $region35: #{tpu_custom_call.1} parent=1 // pred_check_branch
      %72 = sbr.rel (0) target = $region37
    $region36: #{tpu_custom_call.1} parent=1 // pred_region
      _
    $region37: #{tpu_custom_call.1} parent=1 // pred_fallthru
      _
    // Predicated region
    $region38: #{tpu_custom_call.1} parent=1 // pred_check
      _
    $region39: #{tpu_custom_call.1} parent=1 // pred_check_branch
      %74 = sbr.rel (0) target = $region41
    $region40: #{tpu_custom_call.1} parent=1 // pred_region
      _
    $region41: #{tpu_custom_call.1} parent=1 // pred_fallthru
      _
    // Predicated region
    $region42: #{tpu_custom_call.1} parent=1 // pred_check
      _
    $region43: #{tpu_custom_call.1} parent=1 // pred_check_branch
      %76 = sbr.rel (0) target = $region45
    $region44: #{tpu_custom_call.1} parent=1 // pred_region
      _
    $region45: #{tpu_custom_call.1} parent=1 // pred_fallthru
      _
    // Predicated region
    $region46: #{tpu_custom_call.1} parent=1 // pred_check
      _
    $region47: #{tpu_custom_call.1} parent=1 // pred_check_branch
      %78 = sbr.rel (0) target = $region49
    $region48: #{tpu_custom_call.1} parent=1 // pred_region
      _
    $region49: #{tpu_custom_call.1} parent=1 // pred_fallthru
      _
    // Predicated region
    $region50: #{tpu_custom_call.1} parent=1 // pred_check
      _
    $region51: #{tpu_custom_call.1} parent=1 // pred_check_branch
      %80 = sbr.rel (0) target = $region53
    $region52: #{tpu_custom_call.1} parent=1 // pred_region
      _
    $region53: #{tpu_custom_call.1} parent=1 // pred_fallthru
      _
    // Predicated region
    $region54: #{tpu_custom_call.1} parent=1 // pred_check
      _
    $region55: #{tpu_custom_call.1} parent=1 // pred_check_branch
      %82 = sbr.rel (0) target = $region57
    $region56: #{tpu_custom_call.1} parent=1 // pred_region
      %83 = dma.done [#allocation4], 256
    $region57: #{tpu_custom_call.1} parent=1 // pred_fallthru
      _
    // Predicated region
    $region58: #{tpu_custom_call.1} parent=1 // pred_check
      _
    $region59: #{tpu_custom_call.1} parent=1 // pred_check_branch
      %85 = sbr.rel (0) target = $region61
    $region60: #{tpu_custom_call.1} parent=1 // pred_region
      %86 = dma.done [#allocation7], 256
    $region61: #{tpu_custom_call.1} parent=1 // pred_fallthru
      _
    // Predicated region
    $region62: #{tpu_custom_call.1} parent=1 // pred_check
      _
    $region63: #{tpu_custom_call.1} parent=1 // pred_check_branch
      %88 = sbr.rel (0) target = $region65
    $region64: #{tpu_custom_call.1} parent=1 // pred_region
      %89 = dma.done [#allocation7], 256
    $region65: #{tpu_custom_call.1} parent=1 // pred_fallthru
      _
    %v90 = vld [vmem:[%s3] sm:$0xff]
    %v91 = vld [vmem:[%s3 + $0x8] sm:$0xff]
    %v92 = vld [vmem:[%s3 + $0x10] sm:$0xff]
    %v93 = vld [vmem:[%s3 + $0x18] sm:$0xff]
    %v94 = vld [vmem:[%s0] sm:$0xff]
    %v95 = vld [vmem:[%s0 + $0x8] sm:$0xff]
    %v96 = vld [vmem:[#allocation3] sm:$0xff]
    %v97 = vld [vmem:[#allocation3 + $0x8] sm:$0xff]
    %v98 = vld [vmem:[%s4] sm:$0x1]
    %v100 = vlaneseq
    %v101 = vshrl.u32 %v100, 7
    %v102 = vsub.s32 0, %v101
    %v103 = vrot.slane %v98, %v102
    %vm105 = vcmask 130048
    %v107 = vsel %vm105, %v94, 0
    %v110 = vsel %vm105, %v95, 0
    %112 = vmatprep.subr.mxu0 0.0
    %113 = vmatpush1.msra.mxu0 0.0
    %114 = vmatprep.subr.mxu0 0.0
    %115 = vmatpush1.msra.mxu0 0.0
    %116 = vmatprep.subr.mxu0 0.0
    %117 = vmatpush1.msra.mxu0 0.0
    %118 = vmatprep.subr.mxu0 0.0
    %119 = vmatpush1.msra.mxu0 0.0
    %120 = vmatprep.subr.mxu0 0.0
    %121 = vmatpush1.msra.mxu0 0.0
    %122 = vmatprep.subr.mxu0 0.0
    %123 = vmatpush1.msra.mxu0 0.0
    %124 = vmatprep.subr.mxu0 0.0
    %125 = vmatpush1.msra.mxu0 0.0
    %126 = vmatprep.subr.mxu0 0.0
    %127 = vmatpush1.msra.mxu0 0.0
    %128 = vmatprep.subr.mxu0 0.0
    %129 = vmatpush1.msra.mxu0 0.0
    %130 = vmatprep.subr.mxu0 0.0
    %131 = vmatpush1.msra.mxu0 0.0
    %132 = vmatprep.subr.mxu0 0.0
    %133 = vmatpush1.msra.mxu0 0.0
    %134 = vmatprep.subr.mxu0 0.0
    %135 = vmatpush1.msra.mxu0 0.0
    %136 = vmatprep.subr.mxu0 0.0
    %137 = vmatpush1.msra.mxu0 0.0
    %138 = vmatprep.subr.mxu0 0.0
    %139 = vmatpush1.msra.mxu0 0.0
    %140 = vmatprep.subr.mxu0 0.0
    %141 = vmatpush1.msra.mxu0 %v97
    %142 = vmatprep.subr.mxu0 0.0
    %143 = vmatpush1.msra.mxu0 %v96
    %144 = vmatprep.subr.mxu0 0.0
    %145 = vmatpush2.msra.mxu0 0.0
    %146 = vmatprep.subr.mxu0 0.0
    %147 = vmatpush2.msra.mxu0 0.0
    %148 = vmatprep.subr.mxu0 0.0
    %149 = vmatpush2.msra.mxu0 0.0
    %150 = vmatprep.subr.mxu0 0.0
    %151 = vmatpush2.msra.mxu0 0.0
    %152 = vmatprep.subr.mxu0 0.0
    %153 = vmatpush2.msra.mxu0 0.0
    %154 = vmatprep.subr.mxu0 0.0
    %155 = vmatpush2.msra.mxu0 0.0
    %156 = vmatprep.subr.mxu0 0.0
    %157 = vmatpush2.msra.mxu0 0.0
    %158 = vmatprep.subr.mxu0 0.0
    %159 = vmatpush2.msra.mxu0 0.0
    %160 = vmatprep.subr.mxu0 0.0
    %161 = vmatpush2.msra.mxu0 0.0
    %162 = vmatprep.subr.mxu0 0.0
    %163 = vmatpush2.msra.mxu0 0.0
    %164 = vmatprep.subr.mxu0 0.0
    %165 = vmatpush2.msra.mxu0 0.0
    %166 = vmatprep.subr.mxu0 0.0
    %167 = vmatpush2.msra.mxu0 0.0
    %168 = vmatprep.subr.mxu0 0.0
    %169 = vmatpush2.msra.mxu0 0.0
    %170 = vmatprep.subr.mxu0 0.0
    %171 = vmatpush2.msra.mxu0 0.0
    %172 = vmatprep.subr.mxu0 0.0
    %173 = vmatpush2.msra.mxu0 0.0
    %174 = vmatprep.subr.mxu0 0.0
    %175 = vmatpush2.msra.mxu0 0.0
    %176 = vmatprep.mubr.f32.mxu0 0.0
    %177 = vmatmul.mubr.f32.gmra.mxu0 %v107
    %v178 = vpop.f32.mrf.mxu0
    %v179 = vadd.f32 %v103, %v178
    %v180 = vpop.f32.mrf.mxu0
    %181 = vmatprep.mubr.f32.mxu0 0.0
    %182 = vmatmul.mubr.f32.gmra.mxu0 %v110
    %v183 = vpop.f32.mrf.mxu0
    %v184 = vadd.f32 %v103, %v183
    %v185 = vpop.f32.mrf.mxu0
    %186 = vdwg.mxu0
    %v187 = vld [vmem:[%s1] sm:$0x1]
    %v188 = vld [vmem:[%s1 + $0x2] sm:$0x1]
    %v189 = vld [vmem:[%s1 + $0x1] sm:$0x1]
    %v190 = vld [vmem:[%s1 + $0x3] sm:$0x1]
    %v193 = vrot.slane %v188, 7
    %vm194 = vcmask 1041409
    %v195 = vsel %vm194, %v193, %v187
    %vm196 = vcmask 261120
    %v197 = vsel %vm196, %v195, 0
    %199 = vmatprep.subr.mxu0 0.0
    %200 = vmatpush1.msra.mxu0 0.0
    %201 = vmatprep.subr.mxu0 0.0
    %202 = vmatpush1.msra.mxu0 0.0
    %203 = vmatprep.subr.mxu0 0.0
    %204 = vmatpush1.msra.mxu0 0.0
    %205 = vmatprep.subr.mxu0 0.0
    %206 = vmatpush1.msra.mxu0 0.0
    %207 = vmatprep.subr.mxu0 0.0
    %208 = vmatpush1.msra.mxu0 0.0
    %209 = vmatprep.subr.mxu0 0.0
    %210 = vmatpush1.msra.mxu0 0.0
    %211 = vmatprep.subr.mxu0 0.0
    %212 = vmatpush1.msra.mxu0 0.0
    %213 = vmatprep.subr.mxu0 0.0
    %214 = vmatpush1.msra.mxu0 0.0
    %215 = vmatprep.subr.mxu0 0.0
    %216 = vmatpush1.msra.mxu0 0.0
    %217 = vmatprep.subr.mxu0 0.0
    %218 = vmatpush1.msra.mxu0 0.0
    %219 = vmatprep.subr.mxu0 0.0
    %220 = vmatpush1.msra.mxu0 0.0
    %221 = vmatprep.subr.mxu0 0.0
    %222 = vmatpush1.msra.mxu0 0.0
    %223 = vmatprep.subr.mxu0 0.0
    %224 = vmatpush1.msra.mxu0 %v93
    %225 = vmatprep.subr.mxu0 0.0
    %226 = vmatpush1.msra.mxu0 %v92
    %227 = vmatprep.subr.mxu0 0.0
    %228 = vmatpush1.msra.mxu0 %v91
    %229 = vmatprep.subr.mxu0 0.0
    %230 = vmatpush1.msra.mxu0 %v90
    %231 = vmatprep.subr.mxu0 0.0
    %232 = vmatpush2.msra.mxu0 0.0
    %233 = vmatprep.subr.mxu0 0.0
    %234 = vmatpush2.msra.mxu0 0.0
    %235 = vmatprep.subr.mxu0 0.0
    %236 = vmatpush2.msra.mxu0 0.0
    %237 = vmatprep.subr.mxu0 0.0
    %238 = vmatpush2.msra.mxu0 0.0
    %239 = vmatprep.subr.mxu0 0.0
    %240 = vmatpush2.msra.mxu0 0.0
    %241 = vmatprep.subr.mxu0 0.0
    %242 = vmatpush2.msra.mxu0 0.0
    %243 = vmatprep.subr.mxu0 0.0
    %244 = vmatpush2.msra.mxu0 0.0
    %245 = vmatprep.subr.mxu0 0.0
    %246 = vmatpush2.msra.mxu0 0.0
    %247 = vmatprep.subr.mxu0 0.0
    %248 = vmatpush2.msra.mxu0 0.0
    %249 = vmatprep.subr.mxu0 0.0
    %250 = vmatpush2.msra.mxu0 0.0
    %251 = vmatprep.subr.mxu0 0.0
    %252 = vmatpush2.msra.mxu0 0.0
    %253 = vmatprep.subr.mxu0 0.0
    %254 = vmatpush2.msra.mxu0 0.0
    %255 = vmatprep.subr.mxu0 0.0
    %256 = vmatpush2.msra.mxu0 0.0
    %257 = vmatprep.subr.mxu0 0.0
    %258 = vmatpush2.msra.mxu0 0.0
    %259 = vmatprep.subr.mxu0 0.0
    %260 = vmatpush2.msra.mxu0 0.0
    %261 = vmatprep.subr.mxu0 0.0
    %262 = vmatpush2.msra.mxu0 0.0
    %263 = vmatprep.mubr.f32.mxu0 0.0
    %264 = vmatmul.mubr.f32.gmra.mxu0 %v197
    %v265 = vpop.f32.mrf.mxu0
    %v266 = vadd.f32 0.0, %v265
    %v267 = vpop.f32.mrf.mxu0
    %268 = vdwg.mxu0
    %v270 = vrot.slane %v266, 1
    %v273 = vadd.f32 %v179, %v266
    %v274 = vadd.f32 %v184, %v270
    %v275 = vxor.u32 %v273, 2147483648
    %v276 = vxor.u32 %v274, 2147483648
    %v277 = vmul.f32 %v275, 1.442695
    %v278 = vpow.pop %v277
    %v279 = vmul.f32 %v276, 1.442695
    %v280 = vpow.pop %v279
    %v281 = vadd.f32 %v278, 1.0
    %v282 = vadd.f32 %v280, 1.0
    %v283 = vrcp.pop %v281
    %v284 = vmul.f32 1.0, %v283
    %v285 = vrcp.pop %v282
    %v286 = vmul.f32 1.0, %v285
    %v287 = vtanh.pop %v273
    %v288 = vtanh.pop %v274
    %291 = vrot.lane.b32.xlu0 %v189, 32
    %v292 = vpop.permute.xlu0 %291
    %293 = vrot.lane.b32.xlu0 %v190, 32
    %v294 = vpop.permute.xlu0 %293
    %v297 = vmul.f32 %v284, %v292
    %v298 = vmul.f32 %v286, %v294
    %301 = vrot.lane.b32.xlu0 %v287, 64
    %v302 = vpop.permute.xlu0 %301
    %303 = vrot.lane.b32.xlu0 %v288, 64
    %v304 = vpop.permute.xlu0 %303
    %v307 = vmul.f32 %v284, %v302
    %v308 = vmul.f32 %v286, %v304
    %311 = vrot.lane.b32.xlu0 %v307, 32
    %v312 = vpop.permute.xlu0 %311
    %313 = vrot.lane.b32.xlu0 %v308, 32
    %v314 = vpop.permute.xlu0 %313
    %v317 = vadd.f32 %v297, %v312
    %v318 = vadd.f32 %v298, %v314
    %v319 = vtanh.pop %v317
    %v320 = vtanh.pop %v318
    %323 = vrot.lane.b32.xlu0 %v319, 64
    %v324 = vpop.permute.xlu0 %323
    %325 = vrot.lane.b32.xlu0 %v320, 64
    %v326 = vpop.permute.xlu0 %325
    %v329 = vmul.f32 %v284, %v324
    %v330 = vmul.f32 %v286, %v326
    %333 = vrot.lane.b32.xlu0 %v329, 32
    %v334 = vpop.permute.xlu0 %333
    %335 = vrot.lane.b32.xlu0 %v330, 32
    %v336 = vpop.permute.xlu0 %335
    %vm339 = vcmask 253952
    %340 = vst.msk [vmem:[#allocation2] sm:$0x1] %vm339, %v334
    %341 = vst.msk [vmem:[#allocation2 + $0x8] sm:$0x1] %vm339, %v336
    %v342 = vrot.slane %v330, 7
    %v343 = vsel %vm194, %v342, %v329
    %344 = vrot.lane.b32.xlu0 %v343, 32
    %v345 = vpop.permute.xlu0 %344
    %v346 = vsel %vm196, %v345, 0
    %348 = vmatprep.subr.mxu0 0.0
    %349 = vmatpush1.msra.mxu0 0.0
    %350 = vmatprep.subr.mxu0 0.0
    %351 = vmatpush1.msra.mxu0 0.0
    %352 = vmatprep.subr.mxu0 0.0
    %353 = vmatpush1.msra.mxu0 0.0
    %354 = vmatprep.subr.mxu0 0.0
    %355 = vmatpush1.msra.mxu0 0.0
    %356 = vmatprep.subr.mxu0 0.0
    %357 = vmatpush1.msra.mxu0 0.0
    %358 = vmatprep.subr.mxu0 0.0
    %359 = vmatpush1.msra.mxu0 0.0
    %360 = vmatprep.subr.mxu0 0.0
    %361 = vmatpush1.msra.mxu0 0.0
    %362 = vmatprep.subr.mxu0 0.0
    %363 = vmatpush1.msra.mxu0 0.0
    %364 = vmatprep.subr.mxu0 0.0
    %365 = vmatpush1.msra.mxu0 0.0
    %366 = vmatprep.subr.mxu0 0.0
    %367 = vmatpush1.msra.mxu0 0.0
    %368 = vmatprep.subr.mxu0 0.0
    %369 = vmatpush1.msra.mxu0 0.0
    %370 = vmatprep.subr.mxu0 0.0
    %371 = vmatpush1.msra.mxu0 0.0
    %372 = vmatprep.subr.mxu0 0.0
    %373 = vmatpush1.msra.mxu0 %v93
    %374 = vmatprep.subr.mxu0 0.0
    %375 = vmatpush1.msra.mxu0 %v92
    %376 = vmatprep.subr.mxu0 0.0
    %377 = vmatpush1.msra.mxu0 %v91
    %378 = vmatprep.subr.mxu0 0.0
    %379 = vmatpush1.msra.mxu0 %v90
    %380 = vmatprep.subr.mxu0 0.0
    %381 = vmatpush2.msra.mxu0 0.0
    %382 = vmatprep.subr.mxu0 0.0
    %383 = vmatpush2.msra.mxu0 0.0
    %384 = vmatprep.subr.mxu0 0.0
    %385 = vmatpush2.msra.mxu0 0.0
    %386 = vmatprep.subr.mxu0 0.0
    %387 = vmatpush2.msra.mxu0 0.0
    %388 = vmatprep.subr.mxu0 0.0
    %389 = vmatpush2.msra.mxu0 0.0
    %390 = vmatprep.subr.mxu0 0.0
    %391 = vmatpush2.msra.mxu0 0.0
    %392 = vmatprep.subr.mxu0 0.0
    %393 = vmatpush2.msra.mxu0 0.0
    %394 = vmatprep.subr.mxu0 0.0
    %395 = vmatpush2.msra.mxu0 0.0
    %396 = vmatprep.subr.mxu0 0.0
    %397 = vmatpush2.msra.mxu0 0.0
    %398 = vmatprep.subr.mxu0 0.0
    %399 = vmatpush2.msra.mxu0 0.0
    %400 = vmatprep.subr.mxu0 0.0
    %401 = vmatpush2.msra.mxu0 0.0
    %402 = vmatprep.subr.mxu0 0.0
    %403 = vmatpush2.msra.mxu0 0.0
    %404 = vmatprep.subr.mxu0 0.0
    %405 = vmatpush2.msra.mxu0 0.0
    %406 = vmatprep.subr.mxu0 0.0
    %407 = vmatpush2.msra.mxu0 0.0
    %408 = vmatprep.subr.mxu0 0.0
    %409 = vmatpush2.msra.mxu0 0.0
    %410 = vmatprep.subr.mxu0 0.0
    %411 = vmatpush2.msra.mxu0 0.0
    %412 = vmatprep.mubr.f32.mxu0 0.0
    %413 = vmatmul.mubr.f32.gmra.mxu0 %v346
    %v414 = vpop.f32.mrf.mxu0
    %v415 = vadd.f32 0.0, %v414
    %v416 = vpop.f32.mrf.mxu0
    %417 = vdwg.mxu0
    %v419 = vrot.slane %v415, 7
    %v422 = vadd.f32 %v179, %v419
    %v423 = vadd.f32 %v184, %v415
    %v424 = vxor.u32 %v422, 2147483648
    %v425 = vxor.u32 %v423, 2147483648
    %v426 = vmul.f32 %v424, 1.442695
    %v427 = vpow.pop %v426
    %v428 = vmul.f32 %v425, 1.442695
    %v429 = vpow.pop %v428
    %v430 = vadd.f32 %v427, 1.0
    %v431 = vadd.f32 %v429, 1.0
    %v432 = vrcp.pop %v430
    %v433 = vmul.f32 1.0, %v432
    %v434 = vrcp.pop %v431
    %v435 = vmul.f32 1.0, %v434
    %v436 = vtanh.pop %v422
    %v437 = vtanh.pop %v423
    %v440 = vrot.slane %v317, 7
    %v441 = vrot.slane %v318, 7
    %v444 = vmul.f32 %v433, %v440
    %v445 = vmul.f32 %v435, %v441
    %448 = vrot.lane.b32.xlu0 %v436, 64
    %v449 = vpop.permute.xlu0 %448
    %450 = vrot.lane.b32.xlu0 %v437, 64
    %v451 = vpop.permute.xlu0 %450
    %v454 = vmul.f32 %v433, %v449
    %v455 = vmul.f32 %v435, %v451
    %458 = vrot.lane.b32.xlu0 %v454, 32
    %v459 = vpop.permute.xlu0 %458
    %460 = vrot.lane.b32.xlu0 %v455, 32
    %v461 = vpop.permute.xlu0 %460
    %v464 = vadd.f32 %v444, %v459
    %v465 = vadd.f32 %v445, %v461
    %v466 = vtanh.pop %v464
    %v467 = vtanh.pop %v465
    %470 = vrot.lane.b32.xlu0 %v466, 64
    %v471 = vpop.permute.xlu0 %470
    %472 = vrot.lane.b32.xlu0 %v467, 64
    %v473 = vpop.permute.xlu0 %472
    %v476 = vmul.f32 %v433, %v471
    %v477 = vmul.f32 %v435, %v473
    %480 = vrot.lane.b32.xlu0 %v476, 32
    %v481 = vpop.permute.xlu0 %480
    %482 = vrot.lane.b32.xlu0 %v477, 32
    %v483 = vpop.permute.xlu0 %482
    %vm486 = vcmask 254977
    %487 = vst.msk [vmem:[#allocation2] sm:$0x2] %vm486, %v481
    %488 = vst.msk [vmem:[#allocation2 + $0x8] sm:$0x2] %vm486, %v483
    %v489 = vrot.slane %v476, 1
    %v490 = vsel %vm194, %v477, %v489
    %491 = vrot.lane.b32.xlu0 %v490, 32
    %v492 = vpop.permute.xlu0 %491
    %v493 = vsel %vm196, %v492, 0
    %495 = vmatprep.subr.mxu0 0.0
    %496 = vmatpush1.msra.mxu0 0.0
    %497 = vmatprep.subr.mxu0 0.0
    %498 = vmatpush1.msra.mxu0 0.0
    %499 = vmatprep.subr.mxu0 0.0
    %500 = vmatpush1.msra.mxu0 0.0
    %501 = vmatprep.subr.mxu0 0.0
    %502 = vmatpush1.msra.mxu0 0.0
    %503 = vmatprep.subr.mxu0 0.0
    %504 = vmatpush1.msra.mxu0 0.0
    %505 = vmatprep.subr.mxu0 0.0
    %506 = vmatpush1.msra.mxu0 0.0
    %507 = vmatprep.subr.mxu0 0.0
    %508 = vmatpush1.msra.mxu0 0.0
    %509 = vmatprep.subr.mxu0 0.0
    %510 = vmatpush1.msra.mxu0 0.0
    %511 = vmatprep.subr.mxu0 0.0
    %512 = vmatpush1.msra.mxu0 0.0
    %513 = vmatprep.subr.mxu0 0.0
    %514 = vmatpush1.msra.mxu0 0.0
    %515 = vmatprep.subr.mxu0 0.0
    %516 = vmatpush1.msra.mxu0 0.0
    %517 = vmatprep.subr.mxu0 0.0
    %518 = vmatpush1.msra.mxu0 0.0
    %519 = vmatprep.subr.mxu0 0.0
    %520 = vmatpush1.msra.mxu0 %v93
    %521 = vmatprep.subr.mxu0 0.0
    %522 = vmatpush1.msra.mxu0 %v92
    %523 = vmatprep.subr.mxu0 0.0
    %524 = vmatpush1.msra.mxu0 %v91
    %525 = vmatprep.subr.mxu0 0.0
    %526 = vmatpush1.msra.mxu0 %v90
    %527 = vmatprep.subr.mxu0 0.0
    %528 = vmatpush2.msra.mxu0 0.0
    %529 = vmatprep.subr.mxu0 0.0
    %530 = vmatpush2.msra.mxu0 0.0
    %531 = vmatprep.subr.mxu0 0.0
    %532 = vmatpush2.msra.mxu0 0.0
    %533 = vmatprep.subr.mxu0 0.0
    %534 = vmatpush2.msra.mxu0 0.0
    %535 = vmatprep.subr.mxu0 0.0
    %536 = vmatpush2.msra.mxu0 0.0
    %537 = vmatprep.subr.mxu0 0.0
    %538 = vmatpush2.msra.mxu0 0.0
    %539 = vmatprep.subr.mxu0 0.0
    %540 = vmatpush2.msra.mxu0 0.0
    %541 = vmatprep.subr.mxu0 0.0
    %542 = vmatpush2.msra.mxu0 0.0
    %543 = vmatprep.subr.mxu0 0.0
    %544 = vmatpush2.msra.mxu0 0.0
    %545 = vmatprep.subr.mxu0 0.0
    %546 = vmatpush2.msra.mxu0 0.0
    %547 = vmatprep.subr.mxu0 0.0
    %548 = vmatpush2.msra.mxu0 0.0
    %549 = vmatprep.subr.mxu0 0.0
    %550 = vmatpush2.msra.mxu0 0.0
    %551 = vmatprep.subr.mxu0 0.0
    %552 = vmatpush2.msra.mxu0 0.0
    %553 = vmatprep.subr.mxu0 0.0
    %554 = vmatpush2.msra.mxu0 0.0
    %555 = vmatprep.subr.mxu0 0.0
    %556 = vmatpush2.msra.mxu0 0.0
    %557 = vmatprep.subr.mxu0 0.0
    %558 = vmatpush2.msra.mxu0 0.0
    %559 = vmatprep.mubr.f32.mxu0 0.0
    %560 = vmatmul.mubr.f32.gmra.mxu0 %v493
    %v561 = vpop.f32.mrf.mxu0
    %v562 = vadd.f32 0.0, %v561
    %v563 = vpop.f32.mrf.mxu0
    %564 = vdwg.mxu0
    %v566 = vrot.slane %v562, 6
    %v567 = vrot.slane %v562, 7
    %v570 = vadd.f32 %v179, %v566
    %v571 = vadd.f32 %v184, %v567
    %v572 = vxor.u32 %v570, 2147483648
    %v573 = vxor.u32 %v571, 2147483648
    %v574 = vmul.f32 %v572, 1.442695
    %v575 = vpow.pop %v574
    %v576 = vmul.f32 %v573, 1.442695
    %v577 = vpow.pop %v576
    %v578 = vadd.f32 %v575, 1.0
    %v579 = vadd.f32 %v577, 1.0
    %v580 = vrcp.pop %v578
    %v581 = vmul.f32 1.0, %v580
    %v582 = vrcp.pop %v579
    %v583 = vmul.f32 1.0, %v582
    %v584 = vtanh.pop %v570
    %v585 = vtanh.pop %v571
    %v588 = vrot.slane %v464, 7
    %v589 = vrot.slane %v465, 7
    %v592 = vmul.f32 %v581, %v588
    %v593 = vmul.f32 %v583, %v589
    %596 = vrot.lane.b32.xlu0 %v584, 64
    %v597 = vpop.permute.xlu0 %596
    %598 = vrot.lane.b32.xlu0 %v585, 64
    %v599 = vpop.permute.xlu0 %598
    %v602 = vmul.f32 %v581, %v597
    %v603 = vmul.f32 %v583, %v599
    %606 = vrot.lane.b32.xlu0 %v602, 32
    %v607 = vpop.permute.xlu0 %606
    %608 = vrot.lane.b32.xlu0 %v603, 32
    %v609 = vpop.permute.xlu0 %608
    %v612 = vadd.f32 %v592, %v607
    %v613 = vadd.f32 %v593, %v609
    %v614 = vtanh.pop %v612
    %v615 = vtanh.pop %v613
    %618 = vrot.lane.b32.xlu0 %v614, 64
    %v619 = vpop.permute.xlu0 %618
    %620 = vrot.lane.b32.xlu0 %v615, 64
    %v621 = vpop.permute.xlu0 %620
    %v624 = vmul.f32 %v581, %v619
    %v625 = vmul.f32 %v583, %v621
    %628 = vrot.lane.b32.xlu0 %v624, 32
    %v629 = vpop.permute.xlu0 %628
    %630 = vrot.lane.b32.xlu0 %v625, 32
    %v631 = vpop.permute.xlu0 %630
    %vm634 = vcmask 256002
    %635 = vst.msk [vmem:[#allocation2] sm:$0x4] %vm634, %v629
    %636 = vst.msk [vmem:[#allocation2 + $0x8] sm:$0x4] %vm634, %v631
    %v637 = vrot.slane %v624, 2
    %v638 = vrot.slane %v625, 1
    %v639 = vsel %vm194, %v638, %v637
    %640 = vrot.lane.b32.xlu0 %v639, 32
    %v641 = vpop.permute.xlu0 %640
    %v642 = vsel %vm196, %v641, 0
    %644 = vmatprep.subr.mxu0 0.0
    %645 = vmatpush1.msra.mxu0 0.0
    %646 = vmatprep.subr.mxu0 0.0
    %647 = vmatpush1.msra.mxu0 0.0
    %648 = vmatprep.subr.mxu0 0.0
    %649 = vmatpush1.msra.mxu0 0.0
    %650 = vmatprep.subr.mxu0 0.0
    %651 = vmatpush1.msra.mxu0 0.0
    %652 = vmatprep.subr.mxu0 0.0
    %653 = vmatpush1.msra.mxu0 0.0
    %654 = vmatprep.subr.mxu0 0.0
    %655 = vmatpush1.msra.mxu0 0.0
    %656 = vmatprep.subr.mxu0 0.0
    %657 = vmatpush1.msra.mxu0 0.0
    %658 = vmatprep.subr.mxu0 0.0
    %659 = vmatpush1.msra.mxu0 0.0
    %660 = vmatprep.subr.mxu0 0.0
    %661 = vmatpush1.msra.mxu0 0.0
    %662 = vmatprep.subr.mxu0 0.0
    %663 = vmatpush1.msra.mxu0 0.0
    %664 = vmatprep.subr.mxu0 0.0
    %665 = vmatpush1.msra.mxu0 0.0
    %666 = vmatprep.subr.mxu0 0.0
    %667 = vmatpush1.msra.mxu0 0.0
    %668 = vmatprep.subr.mxu0 0.0
    %669 = vmatpush1.msra.mxu0 %v93
    %670 = vmatprep.subr.mxu0 0.0
    %671 = vmatpush1.msra.mxu0 %v92
    %672 = vmatprep.subr.mxu0 0.0
    %673 = vmatpush1.msra.mxu0 %v91
    %674 = vmatprep.subr.mxu0 0.0
    %675 = vmatpush1.msra.mxu0 %v90
    %676 = vmatprep.subr.mxu0 0.0
    %677 = vmatpush2.msra.mxu0 0.0
    %678 = vmatprep.subr.mxu0 0.0
    %679 = vmatpush2.msra.mxu0 0.0
    %680 = vmatprep.subr.mxu0 0.0
    %681 = vmatpush2.msra.mxu0 0.0
    %682 = vmatprep.subr.mxu0 0.0
    %683 = vmatpush2.msra.mxu0 0.0
    %684 = vmatprep.subr.mxu0 0.0
    %685 = vmatpush2.msra.mxu0 0.0
    %686 = vmatprep.subr.mxu0 0.0
    %687 = vmatpush2.msra.mxu0 0.0
    %688 = vmatprep.subr.mxu0 0.0
    %689 = vmatpush2.msra.mxu0 0.0
    %690 = vmatprep.subr.mxu0 0.0
    %691 = vmatpush2.msra.mxu0 0.0
    %692 = vmatprep.subr.mxu0 0.0
    %693 = vmatpush2.msra.mxu0 0.0
    %694 = vmatprep.subr.mxu0 0.0
    %695 = vmatpush2.msra.mxu0 0.0
    %696 = vmatprep.subr.mxu0 0.0
    %697 = vmatpush2.msra.mxu0 0.0
    %698 = vmatprep.subr.mxu0 0.0
    %699 = vmatpush2.msra.mxu0 0.0
    %700 = vmatprep.subr.mxu0 0.0
    %701 = vmatpush2.msra.mxu0 0.0
    %702 = vmatprep.subr.mxu0 0.0
    %703 = vmatpush2.msra.mxu0 0.0
    %704 = vmatprep.subr.mxu0 0.0
    %705 = vmatpush2.msra.mxu0 0.0
    %706 = vmatprep.subr.mxu0 0.0
    %707 = vmatpush2.msra.mxu0 0.0
    %708 = vmatprep.mubr.f32.mxu0 0.0
    %709 = vmatmul.mubr.f32.gmra.mxu0 %v642
    %v710 = vpop.f32.mrf.mxu0
    %v711 = vadd.f32 0.0, %v710
    %v712 = vpop.f32.mrf.mxu0
    %713 = vdwg.mxu0
    %v715 = vrot.slane %v711, 5
    %v716 = vrot.slane %v711, 6
    %v719 = vadd.f32 %v179, %v715
    %v720 = vadd.f32 %v184, %v716
    %v721 = vxor.u32 %v719, 2147483648
    %v722 = vxor.u32 %v720, 2147483648
    %v723 = vmul.f32 %v721, 1.442695
    %v724 = vpow.pop %v723
    %v725 = vmul.f32 %v722, 1.442695
    %v726 = vpow.pop %v725
    %v727 = vadd.f32 %v724, 1.0
    %v728 = vadd.f32 %v726, 1.0
    %v729 = vrcp.pop %v727
    %v730 = vmul.f32 1.0, %v729
    %v731 = vrcp.pop %v728
    %v732 = vmul.f32 1.0, %v731
    %v733 = vtanh.pop %v719
    %v734 = vtanh.pop %v720
    %v737 = vrot.slane %v612, 7
    %v738 = vrot.slane %v613, 7
    %v741 = vmul.f32 %v730, %v737
    %v742 = vmul.f32 %v732, %v738
    %745 = vrot.lane.b32.xlu0 %v733, 64
    %v746 = vpop.permute.xlu0 %745
    %747 = vrot.lane.b32.xlu0 %v734, 64
    %v748 = vpop.permute.xlu0 %747
    %v751 = vmul.f32 %v730, %v746
    %v752 = vmul.f32 %v732, %v748
    %755 = vrot.lane.b32.xlu0 %v751, 32
    %v756 = vpop.permute.xlu0 %755
    %757 = vrot.lane.b32.xlu0 %v752, 32
    %v758 = vpop.permute.xlu0 %757
    %v761 = vadd.f32 %v741, %v756
    %v762 = vadd.f32 %v742, %v758
    %v763 = vtanh.pop %v761
    %v764 = vtanh.pop %v762
    %767 = vrot.lane.b32.xlu0 %v763, 64
    %v768 = vpop.permute.xlu0 %767
    %769 = vrot.lane.b32.xlu0 %v764, 64
    %v770 = vpop.permute.xlu0 %769
    %v773 = vmul.f32 %v730, %v768
    %v774 = vmul.f32 %v732, %v770
    %777 = vrot.lane.b32.xlu0 %v773, 32
    %v778 = vpop.permute.xlu0 %777
    %779 = vrot.lane.b32.xlu0 %v774, 32
    %v780 = vpop.permute.xlu0 %779
    %vm783 = vcmask 257027
    %784 = vst.msk [vmem:[#allocation2] sm:$0x8] %vm783, %v778
    %785 = vst.msk [vmem:[#allocation2 + $0x8] sm:$0x8] %vm783, %v780
    %v786 = vrot.slane %v773, 3
    %v787 = vrot.slane %v774, 2
    %v788 = vsel %vm194, %v787, %v786
    %789 = vrot.lane.b32.xlu0 %v788, 32
    %v790 = vpop.permute.xlu0 %789
    %v791 = vsel %vm196, %v790, 0
    %793 = vmatprep.subr.mxu0 0.0
    %794 = vmatpush1.msra.mxu0 0.0
    %795 = vmatprep.subr.mxu0 0.0
    %796 = vmatpush1.msra.mxu0 0.0
    %797 = vmatprep.subr.mxu0 0.0
    %798 = vmatpush1.msra.mxu0 0.0
    %799 = vmatprep.subr.mxu0 0.0
    %800 = vmatpush1.msra.mxu0 0.0
    %801 = vmatprep.subr.mxu0 0.0
    %802 = vmatpush1.msra.mxu0 0.0
    %803 = vmatprep.subr.mxu0 0.0
    %804 = vmatpush1.msra.mxu0 0.0
    %805 = vmatprep.subr.mxu0 0.0
    %806 = vmatpush1.msra.mxu0 0.0
    %807 = vmatprep.subr.mxu0 0.0
    %808 = vmatpush1.msra.mxu0 0.0
    %809 = vmatprep.subr.mxu0 0.0
    %810 = vmatpush1.msra.mxu0 0.0
    %811 = vmatprep.subr.mxu0 0.0
    %812 = vmatpush1.msra.mxu0 0.0
    %813 = vmatprep.subr.mxu0 0.0
    %814 = vmatpush1.msra.mxu0 0.0
    %815 = vmatprep.subr.mxu0 0.0
    %816 = vmatpush1.msra.mxu0 0.0
    %817 = vmatprep.subr.mxu0 0.0
    %818 = vmatpush1.msra.mxu0 %v93
    %819 = vmatprep.subr.mxu0 0.0
    %820 = vmatpush1.msra.mxu0 %v92
    %821 = vmatprep.subr.mxu0 0.0
    %822 = vmatpush1.msra.mxu0 %v91
    %823 = vmatprep.subr.mxu0 0.0
    %824 = vmatpush1.msra.mxu0 %v90
    %825 = vmatprep.subr.mxu0 0.0
    %826 = vmatpush2.msra.mxu0 0.0
    %827 = vmatprep.subr.mxu0 0.0
    %828 = vmatpush2.msra.mxu0 0.0
    %829 = vmatprep.subr.mxu0 0.0
    %830 = vmatpush2.msra.mxu0 0.0
    %831 = vmatprep.subr.mxu0 0.0
    %832 = vmatpush2.msra.mxu0 0.0
    %833 = vmatprep.subr.mxu0 0.0
    %834 = vmatpush2.msra.mxu0 0.0
    %835 = vmatprep.subr.mxu0 0.0
    %836 = vmatpush2.msra.mxu0 0.0
    %837 = vmatprep.subr.mxu0 0.0
    %838 = vmatpush2.msra.mxu0 0.0
    %839 = vmatprep.subr.mxu0 0.0
    %840 = vmatpush2.msra.mxu0 0.0
    %841 = vmatprep.subr.mxu0 0.0
    %842 = vmatpush2.msra.mxu0 0.0
    %843 = vmatprep.subr.mxu0 0.0
    %844 = vmatpush2.msra.mxu0 0.0
    %845 = vmatprep.subr.mxu0 0.0
    %846 = vmatpush2.msra.mxu0 0.0
    %847 = vmatprep.subr.mxu0 0.0
    %848 = vmatpush2.msra.mxu0 0.0
    %849 = vmatprep.subr.mxu0 0.0
    %850 = vmatpush2.msra.mxu0 0.0
    %851 = vmatprep.subr.mxu0 0.0
    %852 = vmatpush2.msra.mxu0 0.0
    %853 = vmatprep.subr.mxu0 0.0
    %854 = vmatpush2.msra.mxu0 0.0
    %855 = vmatprep.subr.mxu0 0.0
    %856 = vmatpush2.msra.mxu0 0.0
    %857 = vmatprep.mubr.f32.mxu0 0.0
    %858 = vmatmul.mubr.f32.gmra.mxu0 %v791
    %v859 = vpop.f32.mrf.mxu0
    %v860 = vadd.f32 0.0, %v859
    %v861 = vpop.f32.mrf.mxu0
    %862 = vdwg.mxu0
    %v864 = vrot.slane %v860, 4
    %v865 = vrot.slane %v860, 5
    %v868 = vadd.f32 %v179, %v864
    %v869 = vadd.f32 %v184, %v865
    %v870 = vxor.u32 %v868, 2147483648
    %v871 = vxor.u32 %v869, 2147483648
    %v872 = vmul.f32 %v870, 1.442695
    %v873 = vpow.pop %v872
    %v874 = vmul.f32 %v871, 1.442695
    %v875 = vpow.pop %v874
    %v876 = vadd.f32 %v873, 1.0
    %v877 = vadd.f32 %v875, 1.0
    %v878 = vrcp.pop %v876
    %v879 = vmul.f32 1.0, %v878
    %v880 = vrcp.pop %v877
    %v881 = vmul.f32 1.0, %v880
    %v882 = vtanh.pop %v868
    %v883 = vtanh.pop %v869
    %v886 = vrot.slane %v761, 7
    %v887 = vrot.slane %v762, 7
    %v890 = vmul.f32 %v879, %v886
    %v891 = vmul.f32 %v881, %v887
    %894 = vrot.lane.b32.xlu0 %v882, 64
    %v895 = vpop.permute.xlu0 %894
    %896 = vrot.lane.b32.xlu0 %v883, 64
    %v897 = vpop.permute.xlu0 %896
    %v900 = vmul.f32 %v879, %v895
    %v901 = vmul.f32 %v881, %v897
    %904 = vrot.lane.b32.xlu0 %v900, 32
    %v905 = vpop.permute.xlu0 %904
    %906 = vrot.lane.b32.xlu0 %v901, 32
    %v907 = vpop.permute.xlu0 %906
    %v910 = vadd.f32 %v890, %v905
    %v911 = vadd.f32 %v891, %v907
    %v912 = vtanh.pop %v910
    %v913 = vtanh.pop %v911
    %916 = vrot.lane.b32.xlu0 %v912, 64
    %v917 = vpop.permute.xlu0 %916
    %918 = vrot.lane.b32.xlu0 %v913, 64
    %v919 = vpop.permute.xlu0 %918
    %v922 = vmul.f32 %v879, %v917
    %v923 = vmul.f32 %v881, %v919
    %926 = vrot.lane.b32.xlu0 %v922, 32
    %v927 = vpop.permute.xlu0 %926
    %928 = vrot.lane.b32.xlu0 %v923, 32
    %v929 = vpop.permute.xlu0 %928
    %vm932 = vcmask 258052
    %933 = vst.msk [vmem:[#allocation2] sm:$0x10] %vm932, %v927
    %934 = vst.msk [vmem:[#allocation2 + $0x8] sm:$0x10] %vm932, %v929
    %v935 = vrot.slane %v922, 4
    %v936 = vrot.slane %v923, 3
    %v937 = vsel %vm194, %v936, %v935
    %938 = vrot.lane.b32.xlu0 %v937, 32
    %v939 = vpop.permute.xlu0 %938
    %v940 = vsel %vm196, %v939, 0
    %942 = vmatprep.subr.mxu0 0.0
    %943 = vmatpush1.msra.mxu0 0.0
    %944 = vmatprep.subr.mxu0 0.0
    %945 = vmatpush1.msra.mxu0 0.0
    %946 = vmatprep.subr.mxu0 0.0
    %947 = vmatpush1.msra.mxu0 0.0
    %948 = vmatprep.subr.mxu0 0.0
    %949 = vmatpush1.msra.mxu0 0.0
    %950 = vmatprep.subr.mxu0 0.0
    %951 = vmatpush1.msra.mxu0 0.0
    %952 = vmatprep.subr.mxu0 0.0
    %953 = vmatpush1.msra.mxu0 0.0
    %954 = vmatprep.subr.mxu0 0.0
    %955 = vmatpush1.msra.mxu0 0.0
    %956 = vmatprep.subr.mxu0 0.0
    %957 = vmatpush1.msra.mxu0 0.0
    %958 = vmatprep.subr.mxu0 0.0
    %959 = vmatpush1.msra.mxu0 0.0
    %960 = vmatprep.subr.mxu0 0.0
    %961 = vmatpush1.msra.mxu0 0.0
    %962 = vmatprep.subr.mxu0 0.0
    %963 = vmatpush1.msra.mxu0 0.0
    %964 = vmatprep.subr.mxu0 0.0
    %965 = vmatpush1.msra.mxu0 0.0
    %966 = vmatprep.subr.mxu0 0.0
    %967 = vmatpush1.msra.mxu0 %v93
    %968 = vmatprep.subr.mxu0 0.0
    %969 = vmatpush1.msra.mxu0 %v92
    %970 = vmatprep.subr.mxu0 0.0
    %971 = vmatpush1.msra.mxu0 %v91
    %972 = vmatprep.subr.mxu0 0.0
    %973 = vmatpush1.msra.mxu0 %v90
    %974 = vmatprep.subr.mxu0 0.0
    %975 = vmatpush2.msra.mxu0 0.0
    %976 = vmatprep.subr.mxu0 0.0
    %977 = vmatpush2.msra.mxu0 0.0
    %978 = vmatprep.subr.mxu0 0.0
    %979 = vmatpush2.msra.mxu0 0.0
    %980 = vmatprep.subr.mxu0 0.0
    %981 = vmatpush2.msra.mxu0 0.0
    %982 = vmatprep.subr.mxu0 0.0
    %983 = vmatpush2.msra.mxu0 0.0
    %984 = vmatprep.subr.mxu0 0.0
    %985 = vmatpush2.msra.mxu0 0.0
    %986 = vmatprep.subr.mxu0 0.0
    %987 = vmatpush2.msra.mxu0 0.0
    %988 = vmatprep.subr.mxu0 0.0
    %989 = vmatpush2.msra.mxu0 0.0
    %990 = vmatprep.subr.mxu0 0.0
    %991 = vmatpush2.msra.mxu0 0.0
    %992 = vmatprep.subr.mxu0 0.0
    %993 = vmatpush2.msra.mxu0 0.0
    %994 = vmatprep.subr.mxu0 0.0
    %995 = vmatpush2.msra.mxu0 0.0
    %996 = vmatprep.subr.mxu0 0.0
    %997 = vmatpush2.msra.mxu0 0.0
    %998 = vmatprep.subr.mxu0 0.0
    %999 = vmatpush2.msra.mxu0 0.0
    %1000 = vmatprep.subr.mxu0 0.0
    %1001 = vmatpush2.msra.mxu0 0.0
    %1002 = vmatprep.subr.mxu0 0.0
    %1003 = vmatpush2.msra.mxu0 0.0
    %1004 = vmatprep.subr.mxu0 0.0
    %1005 = vmatpush2.msra.mxu0 0.0
    %1006 = vmatprep.mubr.f32.mxu0 0.0
    %1007 = vmatmul.mubr.f32.gmra.mxu0 %v940
    %v1008 = vpop.f32.mrf.mxu0
    %v1009 = vadd.f32 0.0, %v1008
    %v1010 = vpop.f32.mrf.mxu0
    %1011 = vdwg.mxu0
    %v1013 = vrot.slane %v1009, 3
    %v1014 = vrot.slane %v1009, 4
    %v1017 = vadd.f32 %v179, %v1013
    %v1018 = vadd.f32 %v184, %v1014
    %v1019 = vxor.u32 %v1017, 2147483648
    %v1020 = vxor.u32 %v1018, 2147483648
    %v1021 = vmul.f32 %v1019, 1.442695
    %v1022 = vpow.pop %v1021
    %v1023 = vmul.f32 %v1020, 1.442695
    %v1024 = vpow.pop %v1023
    %v1025 = vadd.f32 %v1022, 1.0
    %v1026 = vadd.f32 %v1024, 1.0
    %v1027 = vrcp.pop %v1025
    %v1028 = vmul.f32 1.0, %v1027
    %v1029 = vrcp.pop %v1026
    %v1030 = vmul.f32 1.0, %v1029
    %v1031 = vtanh.pop %v1017
    %v1032 = vtanh.pop %v1018
    %v1035 = vrot.slane %v910, 7
    %v1036 = vrot.slane %v911, 7
    %v1039 = vmul.f32 %v1028, %v1035
    %v1040 = vmul.f32 %v1030, %v1036
    %1043 = vrot.lane.b32.xlu0 %v1031, 64
    %v1044 = vpop.permute.xlu0 %1043
    %1045 = vrot.lane.b32.xlu0 %v1032, 64
    %v1046 = vpop.permute.xlu0 %1045
    %v1049 = vmul.f32 %v1028, %v1044
    %v1050 = vmul.f32 %v1030, %v1046
    %1053 = vrot.lane.b32.xlu0 %v1049, 32
    %v1054 = vpop.permute.xlu0 %1053
    %1055 = vrot.lane.b32.xlu0 %v1050, 32
    %v1056 = vpop.permute.xlu0 %1055
    %v1059 = vadd.f32 %v1039, %v1054
    %v1060 = vadd.f32 %v1040, %v1056
    %v1061 = vtanh.pop %v1059
    %v1062 = vtanh.pop %v1060
    %1065 = vrot.lane.b32.xlu0 %v1061, 64
    %v1066 = vpop.permute.xlu0 %1065
    %1067 = vrot.lane.b32.xlu0 %v1062, 64
    %v1068 = vpop.permute.xlu0 %1067
    %v1071 = vmul.f32 %v1028, %v1066
    %v1072 = vmul.f32 %v1030, %v1068
    %1075 = vrot.lane.b32.xlu0 %v1071, 32
    %v1076 = vpop.permute.xlu0 %1075
    %1077 = vrot.lane.b32.xlu0 %v1072, 32
    %v1078 = vpop.permute.xlu0 %1077
    %vm1081 = vcmask 259077
    %1082 = vst.msk [vmem:[#allocation2] sm:$0x20] %vm1081, %v1076
    %1083 = vst.msk [vmem:[#allocation2 + $0x8] sm:$0x20] %vm1081, %v1078
    %v1084 = vrot.slane %v1071, 5
    %v1085 = vrot.slane %v1072, 4
    %v1086 = vsel %vm194, %v1085, %v1084
    %1087 = vrot.lane.b32.xlu0 %v1086, 32
    %v1088 = vpop.permute.xlu0 %1087
    %v1089 = vsel %vm196, %v1088, 0
    %1091 = vmatprep.subr.mxu0 0.0
    %1092 = vmatpush1.msra.mxu0 0.0
    %1093 = vmatprep.subr.mxu0 0.0
    %1094 = vmatpush1.msra.mxu0 0.0
    %1095 = vmatprep.subr.mxu0 0.0
    %1096 = vmatpush1.msra.mxu0 0.0
    %1097 = vmatprep.subr.mxu0 0.0
    %1098 = vmatpush1.msra.mxu0 0.0
    %1099 = vmatprep.subr.mxu0 0.0
    %1100 = vmatpush1.msra.mxu0 0.0
    %1101 = vmatprep.subr.mxu0 0.0
    %1102 = vmatpush1.msra.mxu0 0.0
    %1103 = vmatprep.subr.mxu0 0.0
    %1104 = vmatpush1.msra.mxu0 0.0
    %1105 = vmatprep.subr.mxu0 0.0
    %1106 = vmatpush1.msra.mxu0 0.0
    %1107 = vmatprep.subr.mxu0 0.0
    %1108 = vmatpush1.msra.mxu0 0.0
    %1109 = vmatprep.subr.mxu0 0.0
    %1110 = vmatpush1.msra.mxu0 0.0
    %1111 = vmatprep.subr.mxu0 0.0
    %1112 = vmatpush1.msra.mxu0 0.0
    %1113 = vmatprep.subr.mxu0 0.0
    %1114 = vmatpush1.msra.mxu0 0.0
    %1115 = vmatprep.subr.mxu0 0.0
    %1116 = vmatpush1.msra.mxu0 %v93
    %1117 = vmatprep.subr.mxu0 0.0
    %1118 = vmatpush1.msra.mxu0 %v92
    %1119 = vmatprep.subr.mxu0 0.0
    %1120 = vmatpush1.msra.mxu0 %v91
    %1121 = vmatprep.subr.mxu0 0.0
    %1122 = vmatpush1.msra.mxu0 %v90
    %1123 = vmatprep.subr.mxu0 0.0
    %1124 = vmatpush2.msra.mxu0 0.0
    %1125 = vmatprep.subr.mxu0 0.0
    %1126 = vmatpush2.msra.mxu0 0.0
    %1127 = vmatprep.subr.mxu0 0.0
    %1128 = vmatpush2.msra.mxu0 0.0
    %1129 = vmatprep.subr.mxu0 0.0
    %1130 = vmatpush2.msra.mxu0 0.0
    %1131 = vmatprep.subr.mxu0 0.0
    %1132 = vmatpush2.msra.mxu0 0.0
    %1133 = vmatprep.subr.mxu0 0.0
    %1134 = vmatpush2.msra.mxu0 0.0
    %1135 = vmatprep.subr.mxu0 0.0
    %1136 = vmatpush2.msra.mxu0 0.0
    %1137 = vmatprep.subr.mxu0 0.0
    %1138 = vmatpush2.msra.mxu0 0.0
    %1139 = vmatprep.subr.mxu0 0.0
    %1140 = vmatpush2.msra.mxu0 0.0
    %1141 = vmatprep.subr.mxu0 0.0
    %1142 = vmatpush2.msra.mxu0 0.0
    %1143 = vmatprep.subr.mxu0 0.0
    %1144 = vmatpush2.msra.mxu0 0.0
    %1145 = vmatprep.subr.mxu0 0.0
    %1146 = vmatpush2.msra.mxu0 0.0
    %1147 = vmatprep.subr.mxu0 0.0
    %1148 = vmatpush2.msra.mxu0 0.0
    %1149 = vmatprep.subr.mxu0 0.0
    %1150 = vmatpush2.msra.mxu0 0.0
    %1151 = vmatprep.subr.mxu0 0.0
    %1152 = vmatpush2.msra.mxu0 0.0
    %1153 = vmatprep.subr.mxu0 0.0
    %1154 = vmatpush2.msra.mxu0 0.0
    %1155 = vmatprep.mubr.f32.mxu0 0.0
    %1156 = vmatmul.mubr.f32.gmra.mxu0 %v1089
    %v1157 = vpop.f32.mrf.mxu0
    %v1158 = vadd.f32 0.0, %v1157
    %v1159 = vpop.f32.mrf.mxu0
    %1160 = vdwg.mxu0
    %v1162 = vrot.slane %v1158, 2
    %v1163 = vrot.slane %v1158, 3
    %v1166 = vadd.f32 %v179, %v1162
    %v1167 = vadd.f32 %v184, %v1163
    %v1168 = vxor.u32 %v1166, 2147483648
    %v1169 = vxor.u32 %v1167, 2147483648
    %v1170 = vmul.f32 %v1168, 1.442695
    %v1171 = vpow.pop %v1170
    %v1172 = vmul.f32 %v1169, 1.442695
    %v1173 = vpow.pop %v1172
    %v1174 = vadd.f32 %v1171, 1.0
    %v1175 = vadd.f32 %v1173, 1.0
    %v1176 = vrcp.pop %v1174
    %v1177 = vmul.f32 1.0, %v1176
    %v1178 = vrcp.pop %v1175
    %v1179 = vmul.f32 1.0, %v1178
    %v1180 = vtanh.pop %v1166
    %v1181 = vtanh.pop %v1167
    %v1184 = vrot.slane %v1059, 7
    %v1185 = vrot.slane %v1060, 7
    %v1188 = vmul.f32 %v1177, %v1184
    %v1189 = vmul.f32 %v1179, %v1185
    %1192 = vrot.lane.b32.xlu0 %v1180, 64
    %v1193 = vpop.permute.xlu0 %1192
    %1194 = vrot.lane.b32.xlu0 %v1181, 64
    %v1195 = vpop.permute.xlu0 %1194
    %v1198 = vmul.f32 %v1177, %v1193
    %v1199 = vmul.f32 %v1179, %v1195
    %1202 = vrot.lane.b32.xlu0 %v1198, 32
    %v1203 = vpop.permute.xlu0 %1202
    %1204 = vrot.lane.b32.xlu0 %v1199, 32
    %v1205 = vpop.permute.xlu0 %1204
    %v1208 = vadd.f32 %v1188, %v1203
    %v1209 = vadd.f32 %v1189, %v1205
    %v1210 = vtanh.pop %v1208
    %v1211 = vtanh.pop %v1209
    %1214 = vrot.lane.b32.xlu0 %v1210, 64
    %v1215 = vpop.permute.xlu0 %1214
    %1216 = vrot.lane.b32.xlu0 %v1211, 64
    %v1217 = vpop.permute.xlu0 %1216
    %v1220 = vmul.f32 %v1177, %v1215
    %v1221 = vmul.f32 %v1179, %v1217
    %1224 = vrot.lane.b32.xlu0 %v1220, 32
    %v1225 = vpop.permute.xlu0 %1224
    %1226 = vrot.lane.b32.xlu0 %v1221, 32
    %v1227 = vpop.permute.xlu0 %1226
    %vm1230 = vcmask 260102
    %1231 = vst.msk [vmem:[#allocation2] sm:$0x40] %vm1230, %v1225
    %1232 = vst.msk [vmem:[#allocation2 + $0x8] sm:$0x40] %vm1230, %v1227
    %v1233 = vrot.slane %v1220, 6
    %v1234 = vrot.slane %v1221, 5
    %v1235 = vsel %vm194, %v1234, %v1233
    %1236 = vrot.lane.b32.xlu0 %v1235, 32
    %v1237 = vpop.permute.xlu0 %1236
    %v1238 = vsel %vm196, %v1237, 0
    %1240 = vmatprep.subr.mxu0 0.0
    %1241 = vmatpush1.msra.mxu0 0.0
    %1242 = vmatprep.subr.mxu0 0.0
    %1243 = vmatpush1.msra.mxu0 0.0
    %1244 = vmatprep.subr.mxu0 0.0
    %1245 = vmatpush1.msra.mxu0 0.0
    %1246 = vmatprep.subr.mxu0 0.0
    %1247 = vmatpush1.msra.mxu0 0.0
    %1248 = vmatprep.subr.mxu0 0.0
    %1249 = vmatpush1.msra.mxu0 0.0
    %1250 = vmatprep.subr.mxu0 0.0
    %1251 = vmatpush1.msra.mxu0 0.0
    %1252 = vmatprep.subr.mxu0 0.0
    %1253 = vmatpush1.msra.mxu0 0.0
    %1254 = vmatprep.subr.mxu0 0.0
    %1255 = vmatpush1.msra.mxu0 0.0
    %1256 = vmatprep.subr.mxu0 0.0
    %1257 = vmatpush1.msra.mxu0 0.0
    %1258 = vmatprep.subr.mxu0 0.0
    %1259 = vmatpush1.msra.mxu0 0.0
    %1260 = vmatprep.subr.mxu0 0.0
    %1261 = vmatpush1.msra.mxu0 0.0
    %1262 = vmatprep.subr.mxu0 0.0
    %1263 = vmatpush1.msra.mxu0 0.0
    %1264 = vmatprep.subr.mxu0 0.0
    %1265 = vmatpush1.msra.mxu0 %v93
    %1266 = vmatprep.subr.mxu0 0.0
    %1267 = vmatpush1.msra.mxu0 %v92
    %1268 = vmatprep.subr.mxu0 0.0
    %1269 = vmatpush1.msra.mxu0 %v91
    %1270 = vmatprep.subr.mxu0 0.0
    %1271 = vmatpush1.msra.mxu0 %v90
    %1272 = vmatprep.subr.mxu0 0.0
    %1273 = vmatpush2.msra.mxu0 0.0
    %1274 = vmatprep.subr.mxu0 0.0
    %1275 = vmatpush2.msra.mxu0 0.0
    %1276 = vmatprep.subr.mxu0 0.0
    %1277 = vmatpush2.msra.mxu0 0.0
    %1278 = vmatprep.subr.mxu0 0.0
    %1279 = vmatpush2.msra.mxu0 0.0
    %1280 = vmatprep.subr.mxu0 0.0
    %1281 = vmatpush2.msra.mxu0 0.0
    %1282 = vmatprep.subr.mxu0 0.0
    %1283 = vmatpush2.msra.mxu0 0.0
    %1284 = vmatprep.subr.mxu0 0.0
    %1285 = vmatpush2.msra.mxu0 0.0
    %1286 = vmatprep.subr.mxu0 0.0
    %1287 = vmatpush2.msra.mxu0 0.0
    %1288 = vmatprep.subr.mxu0 0.0
    %1289 = vmatpush2.msra.mxu0 0.0
    %1290 = vmatprep.subr.mxu0 0.0
    %1291 = vmatpush2.msra.mxu0 0.0
    %1292 = vmatprep.subr.mxu0 0.0
    %1293 = vmatpush2.msra.mxu0 0.0
    %1294 = vmatprep.subr.mxu0 0.0
    %1295 = vmatpush2.msra.mxu0 0.0
    %1296 = vmatprep.subr.mxu0 0.0
    %1297 = vmatpush2.msra.mxu0 0.0
    %1298 = vmatprep.subr.mxu0 0.0
    %1299 = vmatpush2.msra.mxu0 0.0
    %1300 = vmatprep.subr.mxu0 0.0
    %1301 = vmatpush2.msra.mxu0 0.0
    %1302 = vmatprep.subr.mxu0 0.0
    %1303 = vmatpush2.msra.mxu0 0.0
    %1304 = vmatprep.mubr.f32.mxu0 0.0
    %1305 = vmatmul.mubr.f32.gmra.mxu0 %v1238
    %v1306 = vpop.f32.mrf.mxu0
    %v1307 = vadd.f32 0.0, %v1306
    %v1308 = vpop.f32.mrf.mxu0
    %1309 = vdwg.mxu0
    %v1311 = vrot.slane %v1307, 1
    %v1312 = vrot.slane %v1307, 2
    %v1315 = vadd.f32 %v179, %v1311
    %v1316 = vadd.f32 %v184, %v1312
    %v1317 = vxor.u32 %v1315, 2147483648
    %v1318 = vxor.u32 %v1316, 2147483648
    %v1319 = vmul.f32 %v1317, 1.442695
    %v1320 = vpow.pop %v1319
    %v1321 = vmul.f32 %v1318, 1.442695
    %v1322 = vpow.pop %v1321
    %v1323 = vadd.f32 %v1320, 1.0
    %v1324 = vadd.f32 %v1322, 1.0
    %v1325 = vrcp.pop %v1323
    %v1326 = vmul.f32 1.0, %v1325
    %v1327 = vrcp.pop %v1324
    %v1328 = vmul.f32 1.0, %v1327
    %v1329 = vtanh.pop %v1315
    %v1330 = vtanh.pop %v1316
    %v1333 = vrot.slane %v1208, 7
    %v1334 = vrot.slane %v1209, 7
    %v1337 = vmul.f32 %v1326, %v1333
    %v1338 = vmul.f32 %v1328, %v1334
    %1341 = vrot.lane.b32.xlu0 %v1329, 64
    %v1342 = vpop.permute.xlu0 %1341
    %1343 = vrot.lane.b32.xlu0 %v1330, 64
    %v1344 = vpop.permute.xlu0 %1343
    %v1347 = vmul.f32 %v1326, %v1342
    %v1348 = vmul.f32 %v1328, %v1344
    %1351 = vrot.lane.b32.xlu0 %v1347, 32
    %v1352 = vpop.permute.xlu0 %1351
    %1353 = vrot.lane.b32.xlu0 %v1348, 32
    %v1354 = vpop.permute.xlu0 %1353
    %v1357 = vadd.f32 %v1337, %v1352
    %v1358 = vadd.f32 %v1338, %v1354
    %v1359 = vtanh.pop %v1357
    %v1360 = vtanh.pop %v1358
    %1363 = vrot.lane.b32.xlu0 %v1359, 64
    %v1364 = vpop.permute.xlu0 %1363
    %1365 = vrot.lane.b32.xlu0 %v1360, 64
    %v1366 = vpop.permute.xlu0 %1365
    %v1369 = vmul.f32 %v1326, %v1364
    %v1370 = vmul.f32 %v1328, %v1366
    %1373 = vrot.lane.b32.xlu0 %v1369, 32
    %v1374 = vpop.permute.xlu0 %1373
    %1375 = vrot.lane.b32.xlu0 %v1370, 32
    %v1376 = vpop.permute.xlu0 %1375
    %vm1379 = vcmask 261127
    %1380 = vst.msk [vmem:[#allocation2] sm:$0x80] %vm1379, %v1374
    %1381 = vst.msk [vmem:[#allocation2 + $0x8] sm:$0x80] %vm1379, %v1376
    %1382 = vst.msk [vmem:[#allocation12 - $0x7] sm:$0x80] %vm1379, %v1374
    %1383 = vst.msk [vmem:[#allocation12 - $0x5] sm:$0x80] %vm1379, %v1376
    %1386 = vrot.lane.b32.xlu0 %v1357, 96
    %v1387 = vpop.permute.xlu0 %1386
    %1388 = vrot.lane.b32.xlu0 %v1358, 96
    %v1389 = vpop.permute.xlu0 %1388
    %1392 = vst.msk [vmem:[#allocation12 - $0x6] sm:$0x80] %vm1379, %v1387
    %1393 = vst.msk [vmem:[#allocation12 - $0x4] sm:$0x80] %vm1379, %v1389
    %v1394 = vld [vmem:[#allocation2] sm:$0xff]
    %v1395 = vld [vmem:[#allocation2 + $0x8] sm:$0xff]
    %v1396 = vld [vmem:[#allocation6] sm:$0xff]
    %v1397 = vld [vmem:[#allocation6 + $0x8] sm:$0xff]
    %v1398 = vld [vmem:[%s8] sm:$0xff]
    %v1399 = vld [vmem:[%s8 + $0x8] sm:$0xff]
    %v1400 = vld [vmem:[%s8 + $0x10] sm:$0xff]
    %v1401 = vld [vmem:[%s8 + $0x18] sm:$0xff]
    %v1403 = vsel %vm196, %v1394, 0
    %v1406 = vsel %vm196, %v1395, 0
    %1408 = vmatprep.subr.mxu0 0.0
    %1409 = vmatpush1.msra.mxu0 0.0
    %1410 = vmatprep.subr.mxu0 0.0
    %1411 = vmatpush1.msra.mxu0 0.0
    %1412 = vmatprep.subr.mxu0 0.0
    %1413 = vmatpush1.msra.mxu0 0.0
    %1414 = vmatprep.subr.mxu0 0.0
    %1415 = vmatpush1.msra.mxu0 0.0
    %1416 = vmatprep.subr.mxu0 0.0
    %1417 = vmatpush1.msra.mxu0 0.0
    %1418 = vmatprep.subr.mxu0 0.0
    %1419 = vmatpush1.msra.mxu0 0.0
    %1420 = vmatprep.subr.mxu0 0.0
    %1421 = vmatpush1.msra.mxu0 0.0
    %1422 = vmatprep.subr.mxu0 0.0
    %1423 = vmatpush1.msra.mxu0 0.0
    %1424 = vmatprep.subr.mxu0 0.0
    %1425 = vmatpush1.msra.mxu0 0.0
    %1426 = vmatprep.subr.mxu0 0.0
    %1427 = vmatpush1.msra.mxu0 0.0
    %1428 = vmatprep.subr.mxu0 0.0
    %1429 = vmatpush1.msra.mxu0 0.0
    %1430 = vmatprep.subr.mxu0 0.0
    %1431 = vmatpush1.msra.mxu0 0.0
    %1432 = vmatprep.subr.mxu0 0.0
    %1433 = vmatpush1.msra.mxu0 %v1401
    %1434 = vmatprep.subr.mxu0 0.0
    %1435 = vmatpush1.msra.mxu0 %v1400
    %1436 = vmatprep.subr.mxu0 0.0
    %1437 = vmatpush1.msra.mxu0 %v1399
    %1438 = vmatprep.subr.mxu0 0.0
    %1439 = vmatpush1.msra.mxu0 %v1398
    %1440 = vmatprep.subr.mxu0 0.0
    %1441 = vmatpush2.msra.mxu0 0.0
    %1442 = vmatprep.subr.mxu0 0.0
    %1443 = vmatpush2.msra.mxu0 0.0
    %1444 = vmatprep.subr.mxu0 0.0
    %1445 = vmatpush2.msra.mxu0 0.0
    %1446 = vmatprep.subr.mxu0 0.0
    %1447 = vmatpush2.msra.mxu0 0.0
    %1448 = vmatprep.subr.mxu0 0.0
    %1449 = vmatpush2.msra.mxu0 0.0
    %1450 = vmatprep.subr.mxu0 0.0
    %1451 = vmatpush2.msra.mxu0 0.0
    %1452 = vmatprep.subr.mxu0 0.0
    %1453 = vmatpush2.msra.mxu0 0.0
    %1454 = vmatprep.subr.mxu0 0.0
    %1455 = vmatpush2.msra.mxu0 0.0
    %1456 = vmatprep.subr.mxu0 0.0
    %1457 = vmatpush2.msra.mxu0 0.0
    %1458 = vmatprep.subr.mxu0 0.0
    %1459 = vmatpush2.msra.mxu0 0.0
    %1460 = vmatprep.subr.mxu0 0.0
    %1461 = vmatpush2.msra.mxu0 0.0
    %1462 = vmatprep.subr.mxu0 0.0
    %1463 = vmatpush2.msra.mxu0 0.0
    %1464 = vmatprep.subr.mxu0 0.0
    %1465 = vmatpush2.msra.mxu0 0.0
    %1466 = vmatprep.subr.mxu0 0.0
    %1467 = vmatpush2.msra.mxu0 0.0
    %1468 = vmatprep.subr.mxu0 0.0
    %1469 = vmatpush2.msra.mxu0 0.0
    %1470 = vmatprep.subr.mxu0 0.0
    %1471 = vmatpush2.msra.mxu0 0.0
    %1472 = vmatprep.mubr.f32.mxu0 0.0
    %1473 = vmatmul.mubr.f32.gmra.mxu0 %v1403
    %v1474 = vpop.f32.mrf.mxu0
    %v1475 = vadd.f32 0.0, %v1474
    %v1476 = vpop.f32.mrf.mxu0
    %1477 = vmatprep.mubr.f32.mxu0 0.0
    %1478 = vmatmul.mubr.f32.gmra.mxu0 %v1406
    %v1479 = vpop.f32.mrf.mxu0
    %v1480 = vadd.f32 0.0, %v1479
    %v1481 = vpop.f32.mrf.mxu0
    %1482 = vdwg.mxu0
    %v1484 = vsel %vm196, %v1475, 0
    %v1487 = vsel %vm196, %v1396, 0
    %1489 = vmatprep.subr.mxu0 0.0
    %1490 = vmatpush1.xpose.msra.mxu0 0.0
    %1491 = vmatprep.subr.mxu0 0.0
    %1492 = vmatpush1.xpose.msra.mxu0 0.0
    %1493 = vmatprep.subr.mxu0 0.0
    %1494 = vmatpush1.xpose.msra.mxu0 0.0
    %1495 = vmatprep.subr.mxu0 0.0
    %1496 = vmatpush1.xpose.msra.mxu0 0.0
    %1497 = vmatprep.subr.mxu0 0.0
    %1498 = vmatpush1.xpose.msra.mxu0 0.0
    %1499 = vmatprep.subr.mxu0 0.0
    %1500 = vmatpush1.xpose.msra.mxu0 0.0
    %1501 = vmatprep.subr.mxu0 0.0
    %1502 = vmatpush1.xpose.msra.mxu0 0.0
    %1503 = vmatprep.subr.mxu0 0.0
    %1504 = vmatpush1.xpose.msra.mxu0 0.0
    %1505 = vmatprep.subr.mxu0 0.0
    %1506 = vmatpush1.xpose.msra.mxu0 0.0
    %1507 = vmatprep.subr.mxu0 0.0
    %1508 = vmatpush1.xpose.msra.mxu0 0.0
    %1509 = vmatprep.subr.mxu0 0.0
    %1510 = vmatpush1.xpose.msra.mxu0 0.0
    %1511 = vmatprep.subr.mxu0 0.0
    %1512 = vmatpush1.xpose.msra.mxu0 0.0
    %1513 = vmatprep.subr.mxu0 0.0
    %1514 = vmatpush1.xpose.msra.mxu0 0.0
    %1515 = vmatprep.subr.mxu0 0.0
    %1516 = vmatpush1.xpose.msra.mxu0 0.0
    %1517 = vmatprep.subr.mxu0 0.0
    %1518 = vmatpush1.xpose.msra.mxu0 0.0
    %1519 = vmatprep.subr.mxu0 0.0
    %1520 = vmatpush1.xpose.msra.mxu0 %v1487
    %1521 = vmatprep.subr.mxu0 0.0
    %1522 = vmatpush2.xpose.msra.mxu0 0.0
    %1523 = vmatprep.subr.mxu0 0.0
    %1524 = vmatpush2.xpose.msra.mxu0 0.0
    %1525 = vmatprep.subr.mxu0 0.0
    %1526 = vmatpush2.xpose.msra.mxu0 0.0
    %1527 = vmatprep.subr.mxu0 0.0
    %1528 = vmatpush2.xpose.msra.mxu0 0.0
    %1529 = vmatprep.subr.mxu0 0.0
    %1530 = vmatpush2.xpose.msra.mxu0 0.0
    %1531 = vmatprep.subr.mxu0 0.0
    %1532 = vmatpush2.xpose.msra.mxu0 0.0
    %1533 = vmatprep.subr.mxu0 0.0
    %1534 = vmatpush2.xpose.msra.mxu0 0.0
    %1535 = vmatprep.subr.mxu0 0.0
    %1536 = vmatpush2.xpose.msra.mxu0 0.0
    %1537 = vmatprep.subr.mxu0 0.0
    %1538 = vmatpush2.xpose.msra.mxu0 0.0
    %1539 = vmatprep.subr.mxu0 0.0
    %1540 = vmatpush2.xpose.msra.mxu0 0.0
    %1541 = vmatprep.subr.mxu0 0.0
    %1542 = vmatpush2.xpose.msra.mxu0 0.0
    %1543 = vmatprep.subr.mxu0 0.0
    %1544 = vmatpush2.xpose.msra.mxu0 0.0
    %1545 = vmatprep.subr.mxu0 0.0
    %1546 = vmatpush2.xpose.msra.mxu0 0.0
    %1547 = vmatprep.subr.mxu0 0.0
    %1548 = vmatpush2.xpose.msra.mxu0 0.0
    %1549 = vmatprep.subr.mxu0 0.0
    %1550 = vmatpush2.xpose.msra.mxu0 0.0
    %1551 = vmatprep.subr.mxu0 0.0
    %1552 = vmatpush2.xpose.msra.mxu0 0.0
    %1553 = vmatprep.mubr.f32.mxu0 0.0
    %1554 = vmatmul.mubr.f32.gmra.mxu0 %v1484
    %v1555 = vpop.f32.mrf.mxu0
    %v1556 = vadd.f32 0.0, %v1555
    %v1557 = vpop.f32.mrf.mxu0
    %1558 = vdwg.mxu0
    %v1560 = vsel %vm196, %v1480, 0
    %v1563 = vsel %vm196, %v1397, 0
    %1565 = vmatprep.subr.mxu0 0.0
    %1566 = vmatpush1.xpose.msra.mxu0 0.0
    %1567 = vmatprep.subr.mxu0 0.0
    %1568 = vmatpush1.xpose.msra.mxu0 0.0
    %1569 = vmatprep.subr.mxu0 0.0
    %1570 = vmatpush1.xpose.msra.mxu0 0.0
    %1571 = vmatprep.subr.mxu0 0.0
    %1572 = vmatpush1.xpose.msra.mxu0 0.0
    %1573 = vmatprep.subr.mxu0 0.0
    %1574 = vmatpush1.xpose.msra.mxu0 0.0
    %1575 = vmatprep.subr.mxu0 0.0
    %1576 = vmatpush1.xpose.msra.mxu0 0.0
    %1577 = vmatprep.subr.mxu0 0.0
    %1578 = vmatpush1.xpose.msra.mxu0 0.0
    %1579 = vmatprep.subr.mxu0 0.0
    %1580 = vmatpush1.xpose.msra.mxu0 0.0
    %1581 = vmatprep.subr.mxu0 0.0
    %1582 = vmatpush1.xpose.msra.mxu0 0.0
    %1583 = vmatprep.subr.mxu0 0.0
    %1584 = vmatpush1.xpose.msra.mxu0 0.0
    %1585 = vmatprep.subr.mxu0 0.0
    %1586 = vmatpush1.xpose.msra.mxu0 0.0
    %1587 = vmatprep.subr.mxu0 0.0
    %1588 = vmatpush1.xpose.msra.mxu0 0.0
    %1589 = vmatprep.subr.mxu0 0.0
    %1590 = vmatpush1.xpose.msra.mxu0 0.0
    %1591 = vmatprep.subr.mxu0 0.0
    %1592 = vmatpush1.xpose.msra.mxu0 0.0
    %1593 = vmatprep.subr.mxu0 0.0
    %1594 = vmatpush1.xpose.msra.mxu0 0.0
    %1595 = vmatprep.subr.mxu0 0.0
    %1596 = vmatpush1.xpose.msra.mxu0 %v1563
    %1597 = vmatprep.subr.mxu0 0.0
    %1598 = vmatpush2.xpose.msra.mxu0 0.0
    %1599 = vmatprep.subr.mxu0 0.0
    %1600 = vmatpush2.xpose.msra.mxu0 0.0
    %1601 = vmatprep.subr.mxu0 0.0
    %1602 = vmatpush2.xpose.msra.mxu0 0.0
    %1603 = vmatprep.subr.mxu0 0.0
    %1604 = vmatpush2.xpose.msra.mxu0 0.0
    %1605 = vmatprep.subr.mxu0 0.0
    %1606 = vmatpush2.xpose.msra.mxu0 0.0
    %1607 = vmatprep.subr.mxu0 0.0
    %1608 = vmatpush2.xpose.msra.mxu0 0.0
    %1609 = vmatprep.subr.mxu0 0.0
    %1610 = vmatpush2.xpose.msra.mxu0 0.0
    %1611 = vmatprep.subr.mxu0 0.0
    %1612 = vmatpush2.xpose.msra.mxu0 0.0
    %1613 = vmatprep.subr.mxu0 0.0
    %1614 = vmatpush2.xpose.msra.mxu0 0.0
    %1615 = vmatprep.subr.mxu0 0.0
    %1616 = vmatpush2.xpose.msra.mxu0 0.0
    %1617 = vmatprep.subr.mxu0 0.0
    %1618 = vmatpush2.xpose.msra.mxu0 0.0
    %1619 = vmatprep.subr.mxu0 0.0
    %1620 = vmatpush2.xpose.msra.mxu0 0.0
    %1621 = vmatprep.subr.mxu0 0.0
    %1622 = vmatpush2.xpose.msra.mxu0 0.0
    %1623 = vmatprep.subr.mxu0 0.0
    %1624 = vmatpush2.xpose.msra.mxu0 0.0
    %1625 = vmatprep.subr.mxu0 0.0
    %1626 = vmatpush2.xpose.msra.mxu0 0.0
    %1627 = vmatprep.subr.mxu0 0.0
    %1628 = vmatpush2.xpose.msra.mxu0 0.0
    %1629 = vmatprep.mubr.f32.mxu0 0.0
    %1630 = vmatmul.mubr.f32.gmra.mxu0 %v1560
    %v1631 = vpop.f32.mrf.mxu0
    %v1632 = vadd.f32 0.0, %v1631
    %v1633 = vpop.f32.mrf.mxu0
    %1634 = vdwg.mxu0
    %v1635 = vld [vmem:[%s6] sm:$0x1]
    %v1636 = vld [vmem:[%s6 + $0x1] sm:$0x1]
    %vm1637 = vcmp.gt.f32.partialorder %v1635, 0.5
    %vm1638 = vcmp.gt.f32.partialorder %v1636, 0.5
    %v1639 = vsel %vm1637, 1, 0
    %v1640 = vsel %vm1638, 1, 0
    %v1641 = vlaneseq
    %v1642 = vshrl.u32 %v1641, 7
    %v1643 = vsub.s32 0, %v1642
    %v1644 = vrot.slane %v1639, %v1643
    %v1645 = vlaneseq
    %v1646 = vshrl.u32 %v1645, 7
    %v1647 = vsub.s32 0, %v1646
    %v1648 = vrot.slane %v1640, %v1647
    %vm1649 = vcmp.eq.s32.totalorder %v1644, 1
    %vm1650 = vcmp.eq.s32.totalorder %v1648, 1
    %v1651 = vsel %vm1649, %v1556, -1e+09
    %v1652 = vsel %vm1650, %v1632, -1e+09
    %vm1653 = vcmask 64512
    %v1654 = vsel %vm1653, %v1651, -inf
    %1655 = vmax.xlane.f32.xlu0 %v1654
    %v1656 = vpop.xlane.xlu0 %1655
    %v1657 = vsel %vm1653, %v1652, -inf
    %1658 = vmax.xlane.f32.xlu0 %v1657
    %v1659 = vpop.xlane.xlu0 %1658
    %v1660 = vsub.f32 %v1651, %v1656
    %v1661 = vsub.f32 %v1652, %v1659
    %v1662 = vmul.f32 %v1660, 1.442695
    %v1663 = vpow.pop %v1662
    %v1664 = vmul.f32 %v1661, 1.442695
    %v1665 = vpow.pop %v1664
    %v1666 = vsel %vm1653, %v1663, 0.0
    %1667 = vadd.xlane.f32.xlu0 %v1666
    %v1668 = vpop.xlane.xlu0 %1667
    %v1669 = vsel %vm1653, %v1665, 0.0
    %1670 = vadd.xlane.f32.xlu0 %v1669
    %v1671 = vpop.xlane.xlu0 %1670
    %v1672 = vrcp.pop %v1668
    %v1673 = vrcp.pop %v1671
    %v1674 = vmul.f32 %v1663, %v1672
    %v1675 = vmul.f32 %v1665, %v1673
    %v1677 = vsel %vm1653, %v1674, 0
    %1679 = vmatprep.subr.mxu0 0.0
    %1680 = vmatpush1.msra.mxu0 0.0
    %1681 = vmatprep.subr.mxu0 0.0
    %1682 = vmatpush1.msra.mxu0 0.0
    %1683 = vmatprep.subr.mxu0 0.0
    %1684 = vmatpush1.msra.mxu0 0.0
    %1685 = vmatprep.subr.mxu0 0.0
    %1686 = vmatpush1.msra.mxu0 0.0
    %1687 = vmatprep.subr.mxu0 0.0
    %1688 = vmatpush1.msra.mxu0 0.0
    %1689 = vmatprep.subr.mxu0 0.0
    %1690 = vmatpush1.msra.mxu0 0.0
    %1691 = vmatprep.subr.mxu0 0.0
    %1692 = vmatpush1.msra.mxu0 0.0
    %1693 = vmatprep.subr.mxu0 0.0
    %1694 = vmatpush1.msra.mxu0 0.0
    %1695 = vmatprep.subr.mxu0 0.0
    %1696 = vmatpush1.msra.mxu0 0.0
    %1697 = vmatprep.subr.mxu0 0.0
    %1698 = vmatpush1.msra.mxu0 0.0
    %1699 = vmatprep.subr.mxu0 0.0
    %1700 = vmatpush1.msra.mxu0 0.0
    %1701 = vmatprep.subr.mxu0 0.0
    %1702 = vmatpush1.msra.mxu0 0.0
    %1703 = vmatprep.subr.mxu0 0.0
    %1704 = vmatpush1.msra.mxu0 0.0
    %1705 = vmatprep.subr.mxu0 0.0
    %1706 = vmatpush1.msra.mxu0 0.0
    %1707 = vmatprep.subr.mxu0 0.0
    %1708 = vmatpush1.msra.mxu0 0.0
    %1709 = vmatprep.subr.mxu0 0.0
    %1710 = vmatpush1.msra.mxu0 %v1396
    %1711 = vmatprep.subr.mxu0 0.0
    %1712 = vmatpush2.msra.mxu0 0.0
    %1713 = vmatprep.subr.mxu0 0.0
    %1714 = vmatpush2.msra.mxu0 0.0
    %1715 = vmatprep.subr.mxu0 0.0
    %1716 = vmatpush2.msra.mxu0 0.0
    %1717 = vmatprep.subr.mxu0 0.0
    %1718 = vmatpush2.msra.mxu0 0.0
    %1719 = vmatprep.subr.mxu0 0.0
    %1720 = vmatpush2.msra.mxu0 0.0
    %1721 = vmatprep.subr.mxu0 0.0
    %1722 = vmatpush2.msra.mxu0 0.0
    %1723 = vmatprep.subr.mxu0 0.0
    %1724 = vmatpush2.msra.mxu0 0.0
    %1725 = vmatprep.subr.mxu0 0.0
    %1726 = vmatpush2.msra.mxu0 0.0
    %1727 = vmatprep.subr.mxu0 0.0
    %1728 = vmatpush2.msra.mxu0 0.0
    %1729 = vmatprep.subr.mxu0 0.0
    %1730 = vmatpush2.msra.mxu0 0.0
    %1731 = vmatprep.subr.mxu0 0.0
    %1732 = vmatpush2.msra.mxu0 0.0
    %1733 = vmatprep.subr.mxu0 0.0
    %1734 = vmatpush2.msra.mxu0 0.0
    %1735 = vmatprep.subr.mxu0 0.0
    %1736 = vmatpush2.msra.mxu0 0.0
    %1737 = vmatprep.subr.mxu0 0.0
    %1738 = vmatpush2.msra.mxu0 0.0
    %1739 = vmatprep.subr.mxu0 0.0
    %1740 = vmatpush2.msra.mxu0 0.0
    %1741 = vmatprep.subr.mxu0 0.0
    %1742 = vmatpush2.msra.mxu0 0.0
    %1743 = vmatprep.mubr.f32.mxu0 0.0
    %1744 = vmatmul.mubr.f32.gmra.mxu0 %v1677
    %v1745 = vpop.f32.mrf.mxu0
    %v1746 = vadd.f32 0.0, %v1745
    %v1747 = vpop.f32.mrf.mxu0
    %1748 = vdwg.mxu0
    %v1750 = vsel %vm1653, %v1675, 0
    %1752 = vmatprep.subr.mxu0 0.0
    %1753 = vmatpush1.msra.mxu0 0.0
    %1754 = vmatprep.subr.mxu0 0.0
    %1755 = vmatpush1.msra.mxu0 0.0
    %1756 = vmatprep.subr.mxu0 0.0
    %1757 = vmatpush1.msra.mxu0 0.0
    %1758 = vmatprep.subr.mxu0 0.0
    %1759 = vmatpush1.msra.mxu0 0.0
    %1760 = vmatprep.subr.mxu0 0.0
    %1761 = vmatpush1.msra.mxu0 0.0
    %1762 = vmatprep.subr.mxu0 0.0
    %1763 = vmatpush1.msra.mxu0 0.0
    %1764 = vmatprep.subr.mxu0 0.0
    %1765 = vmatpush1.msra.mxu0 0.0
    %1766 = vmatprep.subr.mxu0 0.0
    %1767 = vmatpush1.msra.mxu0 0.0
    %1768 = vmatprep.subr.mxu0 0.0
    %1769 = vmatpush1.msra.mxu0 0.0
    %1770 = vmatprep.subr.mxu0 0.0
    %1771 = vmatpush1.msra.mxu0 0.0
    %1772 = vmatprep.subr.mxu0 0.0
    %1773 = vmatpush1.msra.mxu0 0.0
    %1774 = vmatprep.subr.mxu0 0.0
    %1775 = vmatpush1.msra.mxu0 0.0
    %1776 = vmatprep.subr.mxu0 0.0
    %1777 = vmatpush1.msra.mxu0 0.0
    %1778 = vmatprep.subr.mxu0 0.0
    %1779 = vmatpush1.msra.mxu0 0.0
    %1780 = vmatprep.subr.mxu0 0.0
    %1781 = vmatpush1.msra.mxu0 0.0
    %1782 = vmatprep.subr.mxu0 0.0
    %1783 = vmatpush1.msra.mxu0 %v1397
    %1784 = vmatprep.subr.mxu0 0.0
    %1785 = vmatpush2.msra.mxu0 0.0
    %1786 = vmatprep.subr.mxu0 0.0
    %1787 = vmatpush2.msra.mxu0 0.0
    %1788 = vmatprep.subr.mxu0 0.0
    %1789 = vmatpush2.msra.mxu0 0.0
    %1790 = vmatprep.subr.mxu0 0.0
    %1791 = vmatpush2.msra.mxu0 0.0
    %1792 = vmatprep.subr.mxu0 0.0
    %1793 = vmatpush2.msra.mxu0 0.0
    %1794 = vmatprep.subr.mxu0 0.0
    %1795 = vmatpush2.msra.mxu0 0.0
    %1796 = vmatprep.subr.mxu0 0.0
    %1797 = vmatpush2.msra.mxu0 0.0
    %1798 = vmatprep.subr.mxu0 0.0
    %1799 = vmatpush2.msra.mxu0 0.0
    %1800 = vmatprep.subr.mxu0 0.0
    %1801 = vmatpush2.msra.mxu0 0.0
    %1802 = vmatprep.subr.mxu0 0.0
    %1803 = vmatpush2.msra.mxu0 0.0
    %1804 = vmatprep.subr.mxu0 0.0
    %1805 = vmatpush2.msra.mxu0 0.0
    %1806 = vmatprep.subr.mxu0 0.0
    %1807 = vmatpush2.msra.mxu0 0.0
    %1808 = vmatprep.subr.mxu0 0.0
    %1809 = vmatpush2.msra.mxu0 0.0
    %1810 = vmatprep.subr.mxu0 0.0
    %1811 = vmatpush2.msra.mxu0 0.0
    %1812 = vmatprep.subr.mxu0 0.0
    %1813 = vmatpush2.msra.mxu0 0.0
    %1814 = vmatprep.subr.mxu0 0.0
    %1815 = vmatpush2.msra.mxu0 0.0
    %1816 = vmatprep.mubr.f32.mxu0 0.0
    %1817 = vmatmul.mubr.f32.gmra.mxu0 %v1750
    %v1818 = vpop.f32.mrf.mxu0
    %v1819 = vadd.f32 0.0, %v1818
    %v1820 = vpop.f32.mrf.mxu0
    %1821 = vdwg.mxu0
    %v1822 = vld [vmem:[#allocation8] sm:$0xff]
    %v1823 = vld [vmem:[#allocation8 + $0x8] sm:$0xff]
    %1824 = vmatprep.subr.mxu0 0.0
    %1825 = vmatpush1.msra.mxu0 0.0
    %1826 = vmatprep.subr.mxu0 0.0
    %1827 = vmatpush1.msra.mxu0 0.0
    %1828 = vmatprep.subr.mxu0 0.0
    %1829 = vmatpush1.msra.mxu0 0.0
    %1830 = vmatprep.subr.mxu0 0.0
    %1831 = vmatpush1.msra.mxu0 0.0
    %1832 = vmatprep.subr.mxu0 0.0
    %1833 = vmatpush1.msra.mxu0 0.0
    %1834 = vmatprep.subr.mxu0 0.0
    %1835 = vmatpush1.msra.mxu0 0.0
    %1836 = vmatprep.subr.mxu0 0.0
    %1837 = vmatpush1.msra.mxu0 0.0
    %1838 = vmatprep.subr.mxu0 0.0
    %1839 = vmatpush1.msra.mxu0 0.0
    %1840 = vmatprep.subr.mxu0 0.0
    %1841 = vmatpush1.msra.mxu0 0.0
    %1842 = vmatprep.subr.mxu0 0.0
    %1843 = vmatpush1.msra.mxu0 0.0
    %1844 = vmatprep.subr.mxu0 0.0
    %1845 = vmatpush1.msra.mxu0 0.0
    %1846 = vmatprep.subr.mxu0 0.0
    %1847 = vmatpush1.msra.mxu0 0.0
    %1848 = vmatprep.subr.mxu0 0.0
    %1849 = vmatpush1.msra.mxu0 0.0
    %1850 = vmatprep.subr.mxu0 0.0
    %1851 = vmatpush1.msra.mxu0 0.0
    %1852 = vmatprep.subr.mxu0 0.0
    %1853 = vmatpush1.msra.mxu0 0.0
    %1854 = vmatprep.subr.mxu0 0.0
    %1855 = vmatpush1.msra.mxu0 %v1822
    %1856 = vmatprep.subr.mxu0 0.0
    %1857 = vmatpush2.msra.mxu0 0.0
    %1858 = vmatprep.subr.mxu0 0.0
    %1859 = vmatpush2.msra.mxu0 0.0
    %1860 = vmatprep.subr.mxu0 0.0
    %1861 = vmatpush2.msra.mxu0 0.0
    %1862 = vmatprep.subr.mxu0 0.0
    %1863 = vmatpush2.msra.mxu0 0.0
    %1864 = vmatprep.subr.mxu0 0.0
    %1865 = vmatpush2.msra.mxu0 0.0
    %1866 = vmatprep.subr.mxu0 0.0
    %1867 = vmatpush2.msra.mxu0 0.0
    %1868 = vmatprep.subr.mxu0 0.0
    %1869 = vmatpush2.msra.mxu0 0.0
    %1870 = vmatprep.subr.mxu0 0.0
    %1871 = vmatpush2.msra.mxu0 0.0
    %1872 = vmatprep.subr.mxu0 0.0
    %1873 = vmatpush2.msra.mxu0 0.0
    %1874 = vmatprep.subr.mxu0 0.0
    %1875 = vmatpush2.msra.mxu0 0.0
    %1876 = vmatprep.subr.mxu0 0.0
    %1877 = vmatpush2.msra.mxu0 0.0
    %1878 = vmatprep.subr.mxu0 0.0
    %1879 = vmatpush2.msra.mxu0 0.0
    %1880 = vmatprep.subr.mxu0 0.0
    %1881 = vmatpush2.msra.mxu0 0.0
    %1882 = vmatprep.subr.mxu0 0.0
    %1883 = vmatpush2.msra.mxu0 0.0
    %1884 = vmatprep.subr.mxu0 0.0
    %1885 = vmatpush2.msra.mxu0 0.0
    %1886 = vmatprep.subr.mxu0 0.0
    %1887 = vmatpush2.msra.mxu0 0.0
    %1888 = vmatprep.mubr.f32.mxu0 0.0
    %1889 = vmatmul.mubr.f32.gmra.mxu0 %v1677
    %v1890 = vpop.f32.mrf.mxu0
    %v1891 = vadd.f32 0.0, %v1890
    %v1892 = vpop.f32.mrf.mxu0
    %1893 = vdwg.mxu0
    %1894 = vmatprep.subr.mxu0 0.0
    %1895 = vmatpush1.msra.mxu0 0.0
    %1896 = vmatprep.subr.mxu0 0.0
    %1897 = vmatpush1.msra.mxu0 0.0
    %1898 = vmatprep.subr.mxu0 0.0
    %1899 = vmatpush1.msra.mxu0 0.0
    %1900 = vmatprep.subr.mxu0 0.0
    %1901 = vmatpush1.msra.mxu0 0.0
    %1902 = vmatprep.subr.mxu0 0.0
    %1903 = vmatpush1.msra.mxu0 0.0
    %1904 = vmatprep.subr.mxu0 0.0
    %1905 = vmatpush1.msra.mxu0 0.0
    %1906 = vmatprep.subr.mxu0 0.0
    %1907 = vmatpush1.msra.mxu0 0.0
    %1908 = vmatprep.subr.mxu0 0.0
    %1909 = vmatpush1.msra.mxu0 0.0
    %1910 = vmatprep.subr.mxu0 0.0
    %1911 = vmatpush1.msra.mxu0 0.0
    %1912 = vmatprep.subr.mxu0 0.0
    %1913 = vmatpush1.msra.mxu0 0.0
    %1914 = vmatprep.subr.mxu0 0.0
    %1915 = vmatpush1.msra.mxu0 0.0
    %1916 = vmatprep.subr.mxu0 0.0
    %1917 = vmatpush1.msra.mxu0 0.0
    %1918 = vmatprep.subr.mxu0 0.0
    %1919 = vmatpush1.msra.mxu0 0.0
    %1920 = vmatprep.subr.mxu0 0.0
    %1921 = vmatpush1.msra.mxu0 0.0
    %1922 = vmatprep.subr.mxu0 0.0
    %1923 = vmatpush1.msra.mxu0 0.0
    %1924 = vmatprep.subr.mxu0 0.0
    %1925 = vmatpush1.msra.mxu0 %v1823
    %1926 = vmatprep.subr.mxu0 0.0
    %1927 = vmatpush2.msra.mxu0 0.0
    %1928 = vmatprep.subr.mxu0 0.0
    %1929 = vmatpush2.msra.mxu0 0.0
    %1930 = vmatprep.subr.mxu0 0.0
    %1931 = vmatpush2.msra.mxu0 0.0
    %1932 = vmatprep.subr.mxu0 0.0
    %1933 = vmatpush2.msra.mxu0 0.0
    %1934 = vmatprep.subr.mxu0 0.0
    %1935 = vmatpush2.msra.mxu0 0.0
    %1936 = vmatprep.subr.mxu0 0.0
    %1937 = vmatpush2.msra.mxu0 0.0
    %1938 = vmatprep.subr.mxu0 0.0
    %1939 = vmatpush2.msra.mxu0 0.0
    %1940 = vmatprep.subr.mxu0 0.0
    %1941 = vmatpush2.msra.mxu0 0.0
    %1942 = vmatprep.subr.mxu0 0.0
    %1943 = vmatpush2.msra.mxu0 0.0
    %1944 = vmatprep.subr.mxu0 0.0
    %1945 = vmatpush2.msra.mxu0 0.0
    %1946 = vmatprep.subr.mxu0 0.0
    %1947 = vmatpush2.msra.mxu0 0.0
    %1948 = vmatprep.subr.mxu0 0.0
    %1949 = vmatpush2.msra.mxu0 0.0
    %1950 = vmatprep.subr.mxu0 0.0
    %1951 = vmatpush2.msra.mxu0 0.0
    %1952 = vmatprep.subr.mxu0 0.0
    %1953 = vmatpush2.msra.mxu0 0.0
    %1954 = vmatprep.subr.mxu0 0.0
    %1955 = vmatpush2.msra.mxu0 0.0
    %1956 = vmatprep.subr.mxu0 0.0
    %1957 = vmatpush2.msra.mxu0 0.0
    %1958 = vmatprep.mubr.f32.mxu0 0.0
    %1959 = vmatmul.mubr.f32.gmra.mxu0 %v1750
    %v1960 = vpop.f32.mrf.mxu0
    %v1961 = vadd.f32 0.0, %v1960
    %v1962 = vpop.f32.mrf.mxu0
    %1963 = vdwg.mxu0
    %vm1964 = vcmask 326656
    %1965 = vst.msk [vmem:[#allocation10] sm:$0xff] %vm1964, %v1891
    %1966 = vst.msk [vmem:[#allocation10 + $0x8] sm:$0xff] %vm1964, %v1961
    %v1967 = vld [vmem:[%s9] sm:$0xff]
    %v1968 = vld [vmem:[%s9 + $0x8] sm:$0xff]
    %v1969 = vld [vmem:[%s9 + $0x10] sm:$0xff]
    %v1970 = vld [vmem:[%s9 + $0x18] sm:$0xff]
    %v1971 = vld [vmem:[%s10] sm:$0xff]
    %v1972 = vld [vmem:[%s10 + $0x8] sm:$0xff]
    %v1973 = vld [vmem:[%s10 + $0x10] sm:$0xff]
    %v1974 = vld [vmem:[%s10 + $0x18] sm:$0xff]
    %v1976 = vsel %vm196, %v1746, 0
    %v1979 = vsel %vm196, %v1819, 0
    %1981 = vmatprep.subr.mxu0 0.0
    %1982 = vmatpush1.msra.mxu0 0.0
    %1983 = vmatprep.subr.mxu0 0.0
    %1984 = vmatpush1.msra.mxu0 0.0
    %1985 = vmatprep.subr.mxu0 0.0
    %1986 = vmatpush1.msra.mxu0 0.0
    %1987 = vmatprep.subr.mxu0 0.0
    %1988 = vmatpush1.msra.mxu0 0.0
    %1989 = vmatprep.subr.mxu0 0.0
    %1990 = vmatpush1.msra.mxu0 0.0
    %1991 = vmatprep.subr.mxu0 0.0
    %1992 = vmatpush1.msra.mxu0 0.0
    %1993 = vmatprep.subr.mxu0 0.0
    %1994 = vmatpush1.msra.mxu0 0.0
    %1995 = vmatprep.subr.mxu0 0.0
    %1996 = vmatpush1.msra.mxu0 0.0
    %1997 = vmatprep.subr.mxu0 0.0
    %1998 = vmatpush1.msra.mxu0 0.0
    %1999 = vmatprep.subr.mxu0 0.0
    %2000 = vmatpush1.msra.mxu0 0.0
    %2001 = vmatprep.subr.mxu0 0.0
    %2002 = vmatpush1.msra.mxu0 0.0
    %2003 = vmatprep.subr.mxu0 0.0
    %2004 = vmatpush1.msra.mxu0 0.0
    %2005 = vmatprep.subr.mxu0 0.0
    %2006 = vmatpush1.msra.mxu0 %v1974
    %2007 = vmatprep.subr.mxu0 0.0
    %2008 = vmatpush1.msra.mxu0 %v1973
    %2009 = vmatprep.subr.mxu0 0.0
    %2010 = vmatpush1.msra.mxu0 %v1972
    %2011 = vmatprep.subr.mxu0 0.0
    %2012 = vmatpush1.msra.mxu0 %v1971
    %2013 = vmatprep.subr.mxu0 0.0
    %2014 = vmatpush2.msra.mxu0 0.0
    %2015 = vmatprep.subr.mxu0 0.0
    %2016 = vmatpush2.msra.mxu0 0.0
    %2017 = vmatprep.subr.mxu0 0.0
    %2018 = vmatpush2.msra.mxu0 0.0
    %2019 = vmatprep.subr.mxu0 0.0
    %2020 = vmatpush2.msra.mxu0 0.0
    %2021 = vmatprep.subr.mxu0 0.0
    %2022 = vmatpush2.msra.mxu0 0.0
    %2023 = vmatprep.subr.mxu0 0.0
    %2024 = vmatpush2.msra.mxu0 0.0
    %2025 = vmatprep.subr.mxu0 0.0
    %2026 = vmatpush2.msra.mxu0 0.0
    %2027 = vmatprep.subr.mxu0 0.0
    %2028 = vmatpush2.msra.mxu0 0.0
    %2029 = vmatprep.subr.mxu0 0.0
    %2030 = vmatpush2.msra.mxu0 0.0
    %2031 = vmatprep.subr.mxu0 0.0
    %2032 = vmatpush2.msra.mxu0 0.0
    %2033 = vmatprep.subr.mxu0 0.0
    %2034 = vmatpush2.msra.mxu0 0.0
    %2035 = vmatprep.subr.mxu0 0.0
    %2036 = vmatpush2.msra.mxu0 0.0
    %2037 = vmatprep.subr.mxu0 0.0
    %2038 = vmatpush2.msra.mxu0 0.0
    %2039 = vmatprep.subr.mxu0 0.0
    %2040 = vmatpush2.msra.mxu0 0.0
    %2041 = vmatprep.subr.mxu0 0.0
    %2042 = vmatpush2.msra.mxu0 0.0
    %2043 = vmatprep.subr.mxu0 0.0
    %2044 = vmatpush2.msra.mxu0 0.0
    %2045 = vmatprep.mubr.f32.mxu0 0.0
    %2046 = vmatmul.mubr.f32.gmra.mxu0 %v1976
    %v2047 = vpop.f32.mrf.mxu0
    %v2048 = vadd.f32 0.0, %v2047
    %v2049 = vpop.f32.mrf.mxu0
    %2050 = vmatprep.mubr.f32.mxu0 0.0
    %2051 = vmatmul.mubr.f32.gmra.mxu0 %v1979
    %v2052 = vpop.f32.mrf.mxu0
    %v2053 = vadd.f32 0.0, %v2052
    %v2054 = vpop.f32.mrf.mxu0
    %2055 = vdwg.mxu0
    %2056 = vmatprep.subr.mxu0 0.0
    %2057 = vmatpush1.msra.mxu0 0.0
    %2058 = vmatprep.subr.mxu0 0.0
    %2059 = vmatpush1.msra.mxu0 0.0
    %2060 = vmatprep.subr.mxu0 0.0
    %2061 = vmatpush1.msra.mxu0 0.0
    %2062 = vmatprep.subr.mxu0 0.0
    %2063 = vmatpush1.msra.mxu0 0.0
    %2064 = vmatprep.subr.mxu0 0.0
    %2065 = vmatpush1.msra.mxu0 0.0
    %2066 = vmatprep.subr.mxu0 0.0
    %2067 = vmatpush1.msra.mxu0 0.0
    %2068 = vmatprep.subr.mxu0 0.0
    %2069 = vmatpush1.msra.mxu0 0.0
    %2070 = vmatprep.subr.mxu0 0.0
    %2071 = vmatpush1.msra.mxu0 0.0
    %2072 = vmatprep.subr.mxu0 0.0
    %2073 = vmatpush1.msra.mxu0 0.0
    %2074 = vmatprep.subr.mxu0 0.0
    %2075 = vmatpush1.msra.mxu0 0.0
    %2076 = vmatprep.subr.mxu0 0.0
    %2077 = vmatpush1.msra.mxu0 0.0
    %2078 = vmatprep.subr.mxu0 0.0
    %2079 = vmatpush1.msra.mxu0 0.0
    %2080 = vmatprep.subr.mxu0 0.0
    %2081 = vmatpush1.msra.mxu0 %v1970
    %2082 = vmatprep.subr.mxu0 0.0
    %2083 = vmatpush1.msra.mxu0 %v1969
    %2084 = vmatprep.subr.mxu0 0.0
    %2085 = vmatpush1.msra.mxu0 %v1968
    %2086 = vmatprep.subr.mxu0 0.0
    %2087 = vmatpush1.msra.mxu0 %v1967
    %2088 = vmatprep.subr.mxu0 0.0
    %2089 = vmatpush2.msra.mxu0 0.0
    %2090 = vmatprep.subr.mxu0 0.0
    %2091 = vmatpush2.msra.mxu0 0.0
    %2092 = vmatprep.subr.mxu0 0.0
    %2093 = vmatpush2.msra.mxu0 0.0
    %2094 = vmatprep.subr.mxu0 0.0
    %2095 = vmatpush2.msra.mxu0 0.0
    %2096 = vmatprep.subr.mxu0 0.0
    %2097 = vmatpush2.msra.mxu0 0.0
    %2098 = vmatprep.subr.mxu0 0.0
    %2099 = vmatpush2.msra.mxu0 0.0
    %2100 = vmatprep.subr.mxu0 0.0
    %2101 = vmatpush2.msra.mxu0 0.0
    %2102 = vmatprep.subr.mxu0 0.0
    %2103 = vmatpush2.msra.mxu0 0.0
    %2104 = vmatprep.subr.mxu0 0.0
    %2105 = vmatpush2.msra.mxu0 0.0
    %2106 = vmatprep.subr.mxu0 0.0
    %2107 = vmatpush2.msra.mxu0 0.0
    %2108 = vmatprep.subr.mxu0 0.0
    %2109 = vmatpush2.msra.mxu0 0.0
    %2110 = vmatprep.subr.mxu0 0.0
    %2111 = vmatpush2.msra.mxu0 0.0
    %2112 = vmatprep.subr.mxu0 0.0
    %2113 = vmatpush2.msra.mxu0 0.0
    %2114 = vmatprep.subr.mxu0 0.0
    %2115 = vmatpush2.msra.mxu0 0.0
    %2116 = vmatprep.subr.mxu0 0.0
    %2117 = vmatpush2.msra.mxu0 0.0
    %2118 = vmatprep.subr.mxu0 0.0
    %2119 = vmatpush2.msra.mxu0 0.0
    %2120 = vmatprep.mubr.f32.mxu0 0.0
    %2121 = vmatmul.mubr.f32.gmra.mxu0 %v1403
    %v2122 = vpop.f32.mrf.mxu0
    %v2123 = vadd.f32 %v2048, %v2122
    %v2124 = vpop.f32.mrf.mxu0
    %2125 = vmatprep.mubr.f32.mxu0 0.0
    %2126 = vmatmul.mubr.f32.gmra.mxu0 %v1406
    %v2127 = vpop.f32.mrf.mxu0
    %v2128 = vadd.f32 %v2053, %v2127
    %v2129 = vpop.f32.mrf.mxu0
    %2130 = vdwg.mxu0
    %v2131 = vld [vmem:[%s12] sm:$0x1]
    %v2133 = vlaneseq
    %v2134 = vshrl.u32 %v2133, 7
    %v2135 = vsub.s32 0, %v2134
    %v2136 = vrot.slane %v2131, %v2135
    %v2138 = vadd.f32 %v2123, %v2136
    %v2139 = vadd.f32 %v2128, %v2136
    %v2140 = vld [vmem:[%s11] sm:$0xff]
    %v2141 = vld [vmem:[%s11 + $0x8] sm:$0xff]
    %2142 = vmatprep.subr.mxu0 0.0
    %2143 = vmatpush1.msra.mxu0 0.0
    %2144 = vmatprep.subr.mxu0 0.0
    %2145 = vmatpush1.msra.mxu0 0.0
    %2146 = vmatprep.subr.mxu0 0.0
    %2147 = vmatpush1.msra.mxu0 0.0
    %2148 = vmatprep.subr.mxu0 0.0
    %2149 = vmatpush1.msra.mxu0 0.0
    %2150 = vmatprep.subr.mxu0 0.0
    %2151 = vmatpush1.msra.mxu0 0.0
    %2152 = vmatprep.subr.mxu0 0.0
    %2153 = vmatpush1.msra.mxu0 0.0
    %2154 = vmatprep.subr.mxu0 0.0
    %2155 = vmatpush1.msra.mxu0 0.0
    %2156 = vmatprep.subr.mxu0 0.0
    %2157 = vmatpush1.msra.mxu0 0.0
    %2158 = vmatprep.subr.mxu0 0.0
    %2159 = vmatpush1.msra.mxu0 0.0
    %2160 = vmatprep.subr.mxu0 0.0
    %2161 = vmatpush1.msra.mxu0 0.0
    %2162 = vmatprep.subr.mxu0 0.0
    %2163 = vmatpush1.msra.mxu0 0.0
    %2164 = vmatprep.subr.mxu0 0.0
    %2165 = vmatpush1.msra.mxu0 0.0
    %2166 = vmatprep.subr.mxu0 0.0
    %2167 = vmatpush1.msra.mxu0 0.0
    %2168 = vmatprep.subr.mxu0 0.0
    %2169 = vmatpush1.msra.mxu0 0.0
    %2170 = vmatprep.subr.mxu0 0.0
    %2171 = vmatpush1.msra.mxu0 %v2141
    %2172 = vmatprep.subr.mxu0 0.0
    %2173 = vmatpush1.msra.mxu0 %v2140
    %2174 = vmatprep.subr.mxu0 0.0
    %2175 = vmatpush2.msra.mxu0 0.0
    %2176 = vmatprep.subr.mxu0 0.0
    %2177 = vmatpush2.msra.mxu0 0.0
    %2178 = vmatprep.subr.mxu0 0.0
    %2179 = vmatpush2.msra.mxu0 0.0
    %2180 = vmatprep.subr.mxu0 0.0
    %2181 = vmatpush2.msra.mxu0 0.0
    %2182 = vmatprep.subr.mxu0 0.0
    %2183 = vmatpush2.msra.mxu0 0.0
    %2184 = vmatprep.subr.mxu0 0.0
    %2185 = vmatpush2.msra.mxu0 0.0
    %2186 = vmatprep.subr.mxu0 0.0
    %2187 = vmatpush2.msra.mxu0 0.0
    %2188 = vmatprep.subr.mxu0 0.0
    %2189 = vmatpush2.msra.mxu0 0.0
    %2190 = vmatprep.subr.mxu0 0.0
    %2191 = vmatpush2.msra.mxu0 0.0
    %2192 = vmatprep.subr.mxu0 0.0
    %2193 = vmatpush2.msra.mxu0 0.0
    %2194 = vmatprep.subr.mxu0 0.0
    %2195 = vmatpush2.msra.mxu0 0.0
    %2196 = vmatprep.subr.mxu0 0.0
    %2197 = vmatpush2.msra.mxu0 0.0
    %2198 = vmatprep.subr.mxu0 0.0
    %2199 = vmatpush2.msra.mxu0 0.0
    %2200 = vmatprep.subr.mxu0 0.0
    %2201 = vmatpush2.msra.mxu0 0.0
    %2202 = vmatprep.subr.mxu0 0.0
    %2203 = vmatpush2.msra.mxu0 0.0
    %2204 = vmatprep.subr.mxu0 0.0
    %2205 = vmatpush2.msra.mxu0 0.0
    %2206 = vmatprep.mubr.f32.mxu0 0.0
    %2207 = vmatmul.mubr.f32.gmra.mxu0 %v107
    %v2208 = vpop.f32.mrf.mxu0
    %v2209 = vadd.f32 0.0, %v2208
    %v2210 = vpop.f32.mrf.mxu0
    %2211 = vmatprep.mubr.f32.mxu0 0.0
    %2212 = vmatmul.mubr.f32.gmra.mxu0 %v110
    %v2213 = vpop.f32.mrf.mxu0
    %v2214 = vadd.f32 0.0, %v2213
    %v2215 = vpop.f32.mrf.mxu0
    %2216 = vdwg.mxu0
    %v2217 = vlaneseq
    %v2218 = vand.u32 %v2217, 127
    %vm2219 = vcmp.eq.s32.totalorder %v2218, 16
    %v2220 = vsel %vm2219, 1, 0
    %vm2221 = vcmp.eq.s32.totalorder %v2220, 1
    %2223 = vset.pattern.permute.xlu0 0
    %2224 = vperm.xlu0 %2223, %v2209
    %v2225 = vpop.permute.xlu0 %2224
    %2228 = vset.pattern.permute.xlu0 0
    %2229 = vperm.xlu0 %2228, %v2214
    %v2230 = vpop.permute.xlu0 %2229
    %v2232 = vsel %vm2221, %v2225, 0.0
    %v2233 = vsel %vm2221, %v2230, 0.0
    %v2234 = vadd.f32 %v2138, %v2232
    %v2235 = vadd.f32 %v2139, %v2233
    %v2236 = vxor.u32 %v2234, 2147483648
    %v2237 = vxor.u32 %v2235, 2147483648
    %v2238 = vmul.f32 %v2236, 1.442695
    %v2239 = vpow.pop %v2238
    %v2240 = vmul.f32 %v2237, 1.442695
    %v2241 = vpow.pop %v2240
    %v2242 = vadd.f32 %v2239, 1.0
    %v2243 = vadd.f32 %v2241, 1.0
    %v2244 = vrcp.pop %v2242
    %v2245 = vmul.f32 1.0, %v2244
    %v2246 = vrcp.pop %v2243
    %v2247 = vmul.f32 1.0, %v2246
    %v2248 = vsel %vm2221, %v2245, %v2234
    %v2249 = vsel %vm2221, %v2247, %v2235
    %vm2250 = vcmask 138240
    %2251 = vst.msk [vmem:[#allocation9] sm:$0xff] %vm2250, %v2248
    %2252 = vst.msk [vmem:[#allocation9 + $0x8] sm:$0xff] %vm2250, %v2249
    // Predicated region
    $region66: #{tpu_custom_call.1} parent=1 // pred_check
      _
    $region67: #{tpu_custom_call.1} parent=1 // pred_check_branch
      %2254 = sbr.rel (0) target = $region69
    $region68: #{tpu_custom_call.1} parent=1 // pred_region
      %s2256 = ssub.s32 256, 256
      %2257 = vsyncadd [#allocation5], %s2256
      %s2258 = sshll.u32 [#allocation9], 4
      %s2259 = int_to_ptr.vmem [resolvable:$true] %s2258
      %2264 = dma.vmem_to_hbm [thread:$0]  %s2259, 256, %s13, [#allocation5], 128, 128, 8
    $region69: #{tpu_custom_call.1} parent=1 // pred_fallthru
      _
    // Predicated region
    $region70: #{tpu_custom_call.1} parent=1 // pred_check
      _
    $region71: #{tpu_custom_call.1} parent=1 // pred_check_branch
      %2266 = sbr.rel (0) target = $region73
    $region72: #{tpu_custom_call.1} parent=1 // pred_region
      %s2268 = ssub.s32 256, 256
      %2269 = vsyncadd [#allocation11], %s2268
      %s2270 = sshll.u32 [#allocation10], 4
      %s2271 = int_to_ptr.vmem [resolvable:$true] %s2270
      %2276 = dma.vmem_to_hbm [thread:$0]  %s2271, 256, %s14, [#allocation11], 128, 128, 8
    $region73: #{tpu_custom_call.1} parent=1 // pred_fallthru
      _
    // Predicated region
    $region74: #{tpu_custom_call.1} parent=1 // pred_check
      _
    $region75: #{tpu_custom_call.1} parent=1 // pred_check_branch
      %2278 = sbr.rel (0) target = $region77
    $region76: #{tpu_custom_call.1} parent=1 // pred_region
      %s2280 = ssub.s32 64, 64
      %2281 = vsyncadd [#allocation11], %s2280
      %s2282 = sshll.u32 [#allocation12], 4
      %s2283 = int_to_ptr.vmem [resolvable:$true] %s2282
      %2288 = dma.vmem_to_hbm [thread:$0]  %s2283, 64, %s15, [#allocation11], 32, 32, 2
    $region77: #{tpu_custom_call.1} parent=1 // pred_fallthru
      _
    // Predicated region
    $region78: #{tpu_custom_call.1} parent=1 // pred_check
      _
    $region79: #{tpu_custom_call.1} parent=1 // pred_check_branch
      %2290 = sbr.rel (0) target = $region81
    $region80: #{tpu_custom_call.1} parent=1 // pred_region
      %2291 = dma.done [#allocation5], 256
    $region81: #{tpu_custom_call.1} parent=1 // pred_fallthru
      _
    // Predicated region
    $region82: #{tpu_custom_call.1} parent=1 // pred_check
      _
    $region83: #{tpu_custom_call.1} parent=1 // pred_check_branch
      %2293 = sbr.rel (0) target = $region85
    $region84: #{tpu_custom_call.1} parent=1 // pred_region
      %2294 = dma.done [#allocation11], 256
    $region85: #{tpu_custom_call.1} parent=1 // pred_fallthru
      _
    // Predicated region
    $region86: #{tpu_custom_call.1} parent=1 // pred_check
      _
    $region87: #{tpu_custom_call.1} parent=1 // pred_check_branch
      %2296 = sbr.rel (0) target = $region89
    $region88: #{tpu_custom_call.1} parent=1 // pred_region
      %2297 = dma.done [#allocation11], 64
    $region89: #{tpu_custom_call.1} parent=1 // pred_fallthru
      _
    %2298 = vsyncpa [#allocation4], 1
    %2299 = vsyncpa [#allocation7], 1
    %2300 = vsyncpa [#allocation5], 1
    %2301 = vsyncpa [#allocation11], 1

</llo_original>
